<compile_context>
chip_gen: v7x
topology: tpu7x:2x2x1
jax: 0.10.0
libtpu: 0.0.40
codegen_flags: <defaults>
</compile_context>

<pallas_src>
import jax
import jax.numpy as jnp
from jax.experimental import pallas as pl
from jax.experimental.pallas import tpu as pltpu

_LN_EPS = 1e-5  # PyTorch nn.LayerNorm default


# ----------------------------------------------------------------------------- kernel
def _make_kernel(n_head, d_v, with_attn, attn_dtype):
    def kernel(q_ref, k_ref, v_ref, mask_ref, mqk_ref, wv_ref, fcw_ref, affine_ref,
               out_ref, *maybe_attn):
        f32 = jnp.float32
        bt, qt, d_model = q_ref.shape
        lk = k_ref.shape[1]

        xq = q_ref[...]                              # (bt, qt, D) -- also the residual
        xk = k_ref[...]                              # (bt, lk, D)
        xv = v_ref[...]                              # (bt, lk, D)
        masked = mask_ref[...].astype(f32) > 0.5     # (bt, qt, lk) bool

        # --- scores for all heads; weight_map folded into the Q/K projections:
        #     score[h, b, q, k] = xq[b, q] . mq[:, h] + xk[b, k] . mk[:, h]
        sq = jnp.dot(xq.reshape(bt * qt, d_model), mqk_ref[0],
                     preferred_element_type=f32).reshape(bt, qt, n_head)
        sk = jnp.dot(xk.reshape(bt * lk, d_model), mqk_ref[1],
                     preferred_element_type=f32).reshape(bt, lk, n_head)

        # --- V projection for all heads in one wide MXU call (N = n_head * d_v)
        pv = jnp.dot(xv.reshape(bt * lk, d_model), wv_ref[...],
                     preferred_element_type=f32).reshape(bt, lk, n_head * d_v)

        neg_big = jnp.float32(-1e10)
        ctx_parts = []
        for h in range(n_head):                      # static unroll; n_head is small
            sq_h = sq[:, :, h][:, :, None]           # (bt, qt, 1)
            sk_h = sk[:, :, h][:, None, :]           # (bt, 1, lk)
            s_h = sq_h + sk_h                        # (bt, qt, lk)
            s_h = jnp.where(masked, neg_big, s_h)    # masked_fill(mask, -1e10)

            m_h = jnp.max(s_h, axis=-1, keepdims=True)
            e_h = jnp.exp(s_h - m_h)
            denom = jnp.sum(e_h, axis=-1, keepdims=True)
            a_h = e_h * (1.0 / denom)                # exact reciprocal on small tensor

            if with_attn:
                maybe_attn[0][h, :, :, :] = a_h.astype(attn_dtype)

            pv_h = pv[:, :, h * d_v:(h + 1) * d_v]   # (bt, lk, d_v) static lane slice
            ctx_parts.append(jnp.einsum("bqk,bkd->bqd", a_h, pv_h,
                                        preferred_element_type=f32))

        # fc applied once with full contraction width K = n_head * d_v
        ctx = jnp.concatenate(ctx_parts, axis=-1)    # (bt, qt, n_head*d_v)
        out = jnp.dot(ctx.reshape(bt * qt, n_head * d_v), fcw_ref[...],
                      preferred_element_type=f32)    # (bt*qt, D)

        # fc bias, LeakyReLU(0.2), (eval) dropout, residual, LayerNorm
        out = out + affine_ref[0:1, :]
        out = jnp.where(out >= 0.0, out, 0.2 * out)
        out = out.reshape(bt, qt, d_model) + xq
        mu = jnp.mean(out, axis=-1, keepdims=True)
        var = jnp.mean(jnp.square(out - mu), axis=-1, keepdims=True)
        out = (out - mu) * jax.lax.rsqrt(var + _LN_EPS)
        out = out * affine_ref[1:2, :] + affine_ref[2:3, :]
        out_ref[...] = out.astype(out_ref.dtype)

    return kernel


# --------------------------------------------------------------------- tiling helpers
def _vmem_capacity_bytes():
    try:
        return int(pltpu.get_tpu_info().vmem_capacity_bytes)
    except Exception:
        return 64 * 1024 * 1024   # conservative: v7x per-TensorCore VMEM


def _tile_vmem_bytes(bt, qt, lk, d_model, n_head, d_v, attn_itemsize):
    f = 4
    dbl = 2  # default double-buffering on the tiled (changing) blocks
    data = dbl * f * bt * (qt * d_model + 2 * lk * d_model + qt * d_model)  # q,k,v,out
    data += dbl * 1 * bt * qt * lk                                          # int8 mask
    data += dbl * attn_itemsize * n_head * bt * qt * lk                     # attn out
    weights = f * (2 * d_model * n_head + 2 * d_model * n_head * d_v + 3 * d_model)
    interm = f * (bt * lk * n_head * d_v            # pv
                  + 3 * bt * qt * lk                # per-head score/exp temporaries
                  + 2 * bt * qt * d_model           # out / residual
                  + bt * qt * n_head * d_v)         # ctx
    return data + weights + interm


def _choose_tiles(sz_b, len_q, len_k, d_model, n_head, d_v, attn_itemsize, vmem_cap):
    budget = int(0.4 * vmem_cap)
    q_cands = [d for d in range(len_q, 0, -1)
               if len_q % d == 0 and (d == len_q or d % 32 == 0)]
    b_cands = [d for d in range(sz_b, 0, -1) if sz_b % d == 0]
    best = None
    for qt in q_cands:
        for bt in b_cands:
            need = _tile_vmem_bytes(bt, qt, len_k, d_model, n_head, d_v, attn_itemsize)
            if need > budget:
                continue
            steps = (sz_b // bt) * (len_q // qt)
            # prefer >= 4 grid steps (>= 2 per v7x TensorCore), then big tiles,
            # then fewer steps (lower per-step overhead).
            key = (min(steps, 4), bt * qt, -steps)
            if best is None or key > best[1]:
                best = ((bt, qt, need), key)
    if best is None:
        bt, qt = 1, q_cands[-1]
        best = ((bt, qt,
                 _tile_vmem_bytes(bt, qt, len_k, d_model, n_head, d_v, attn_itemsize)),
                None)
    return best[0]


# --------------------------------------------------------------------------- wrapper
def map_based_mha(q, k, v, mask, params, *, n_head, d_k, d_v,
                  b_tile=None, q_tile=None, return_attn=True,
                  attn_dtype=jnp.float32):
    f32 = jnp.float32
    sz_b, len_q, d_model = q.shape
    _, len_k, _ = k.shape

    # Fold weight_map (Linear(2*d_k, 1, bias=False)) into the Q/K projections:
    #   mq[:, h] = Wq_h @ wm_q ,  mk[:, h] = Wk_h @ wm_k   (exact rank-1 algebra)
    mq = jnp.einsum("dhk,k->dh", params["wq_t"].reshape(d_model, n_head, d_k),
                    params["wm_q"][0])
    mk = jnp.einsum("dhk,k->dh", params["wk_t"].reshape(d_model, n_head, d_k),
                    params["wm_k"][0])
    mqk = jnp.stack([mq, mk], axis=0).astype(f32)                 # (2, D, H)
    wv_t = params["wv_t"].astype(f32)                             # (D, H*d_v)
    fcw_t = params["fc_w_t"].astype(f32)                          # (H*d_v, D)
    affine = jnp.concatenate([params["fc_b"], params["ln_g"], params["ln_b"]],
                             axis=0).astype(f32)                  # (3, D)
    mask_i8 = (mask != 0).astype(jnp.int8)

    attn_itemsize = jnp.dtype(attn_dtype).itemsize if return_attn else 0
    vmem_cap = _vmem_capacity_bytes()
    bt_auto, qt_auto, _ = _choose_tiles(sz_b, len_q, len_k, d_model, n_head, d_v,
                                        attn_itemsize, vmem_cap)
    bt = b_tile if b_tile is not None else bt_auto
    qt = q_tile if q_tile is not None else qt_auto
    assert sz_b % bt == 0 and len_q % qt == 0, "tiles must divide (sz_b, len_q)"
    need = _tile_vmem_bytes(bt, qt, len_k, d_model, n_head, d_v, attn_itemsize)
    grid = (sz_b // bt, len_q // qt)

    const = dict(pipeline_mode=pl.Buffered(1))   # single-buffer never-changing params
    in_specs = [
        pl.BlockSpec((bt, qt, d_model), lambda b, qi: (b, qi, 0)),          # q
        pl.BlockSpec((bt, len_k, d_model), lambda b, qi: (b, 0, 0)),        # k
        pl.BlockSpec((bt, len_k, d_model), lambda b, qi: (b, 0, 0)),        # v
        pl.BlockSpec((bt, qt, len_k), lambda b, qi: (b, qi, 0)),            # mask int8
        pl.BlockSpec((2, d_model, n_head), lambda b, qi: (0, 0, 0), **const),
        pl.BlockSpec((d_model, n_head * d_v), lambda b, qi: (0, 0), **const),
        pl.BlockSpec((n_head * d_v, d_model), lambda b, qi: (0, 0), **const),
        pl.BlockSpec((3, d_model), lambda b, qi: (0, 0), **const),
    ]
    out_spec_o = pl.BlockSpec((bt, qt, d_model), lambda b, qi: (b, qi, 0))
    out_shape_o = jax.ShapeDtypeStruct((sz_b, len_q, d_model), f32)
    if return_attn:
        out_specs = (out_spec_o,
                     pl.BlockSpec((n_head, bt, qt, len_k),
                                  lambda b, qi: (0, b, qi, 0)))
        out_shape = (out_shape_o,
                     jax.ShapeDtypeStruct((n_head, sz_b, len_q, len_k), attn_dtype))
    else:
        out_specs = out_spec_o
        out_shape = out_shape_o

    vmem_limit = int(min(max(2 * need, 32 * 1024 * 1024), 128 * 1024 * 1024))
    kernel = _make_kernel(n_head, d_v, return_attn, attn_dtype)
    result = pl.pallas_call(
        kernel,
        out_shape=out_shape,
        grid=grid,
        in_specs=in_specs,
        out_specs=out_specs,
        compiler_params=pltpu.CompilerParams(
            dimension_semantics=("parallel", "parallel"),
            vmem_limit_bytes=vmem_limit),
    )(q.astype(f32), k.astype(f32), v.astype(f32), mask_i8,
      mqk, wv_t, fcw_t, affine)

    if not return_attn:
        return result
    out, attn_hmajor = result
    # (H, sz_b, Lq, Lk) is already head-major; the PyTorch layout is a free reshape.
    attn = attn_hmajor.reshape(n_head * sz_b, len_q, len_k)
    return out, attn


# --------------------------------------------------------------------- JAX reference
def ref_mha(q, k, v, mask, params, *, n_head, d_k, d_v):
    """Pure-JAX mirror of the PyTorch forward (eval mode), unfused weights."""
    sz_b, len_q, d_model = q.shape
    _, len_k, _ = k.shape
    pq = (q @ params["wq_t"]).reshape(sz_b, len_q, n_head, d_k)
    pk = (k @ params["wk_t"]).reshape(sz_b, len_k, n_head, d_k)
    pv = (v @ params["wv_t"]).reshape(sz_b, len_k, n_head, d_v)
    pq = jnp.transpose(pq, (2, 0, 1, 3)).reshape(-1, len_q, d_k)
    pk = jnp.transpose(pk, (2, 0, 1, 3)).reshape(-1, len_k, d_k)
    pv = jnp.transpose(pv, (2, 0, 1, 3)).reshape(-1, len_k, d_v)
    attn = (jnp.einsum("bqd,d->bq", pq, params["wm_q"][0])[:, :, None]
            + jnp.einsum("bkd,d->bk", pk, params["wm_k"][0])[:, None, :])
    mask_r = jnp.tile(mask, (n_head, 1, 1))
    attn = jnp.where(mask_r > 0.5, -1e10, attn)
    attn = jax.nn.softmax(attn, axis=2)
    out = attn @ pv
    out = out.reshape(n_head, sz_b, len_q, d_v)
    out = jnp.transpose(out, (1, 2, 0, 3)).reshape(sz_b, len_q, -1)
    out = out @ params["fc_w_t"] + params["fc_b"]
    out = jnp.where(out >= 0, out, 0.2 * out)
    out = out + q
    mu = jnp.mean(out, -1, keepdims=True)
    var = jnp.mean((out - mu) ** 2, -1, keepdims=True)
    out = (out - mu) / jnp.sqrt(var + _LN_EPS) * params["ln_g"] + params["ln_b"]
    return out, attn


if __name__ == "__main__":
    n_head, d_model, d_k, d_v = 2, 32, 8, 8
    sz_b, len_q, len_k = 2, 8, 8

    key = jax.random.PRNGKey(0)
    ks = jax.random.split(key, 12)

    # Deterministic synthetic parameters (shapes from the module __init__).
    params = {
        # Linear weights stored pre-transposed: (in_features, out_features)
        "wq_t": jax.random.normal(ks[0], (d_model, n_head * d_k), jnp.float32) / jnp.sqrt(d_model),
        "wk_t": jax.random.normal(ks[1], (d_model, n_head * d_k), jnp.float32) / jnp.sqrt(d_model),
        "wv_t": jax.random.normal(ks[2], (d_model, n_head * d_k), jnp.float32) / jnp.sqrt(d_model),
        # weight_map Linear(2*d_k, 1, bias=False) split into its q-half and k-half
        "wm_q": jax.random.normal(ks[3], (1, d_k), jnp.float32) / jnp.sqrt(2 * d_k),
        "wm_k": jax.random.normal(ks[4], (1, d_k), jnp.float32) / jnp.sqrt(2 * d_k),
        # fc: Linear(n_head*d_v, d_model), xavier-normal-ish weight + small bias
        "fc_w_t": jax.random.normal(ks[5], (n_head * d_v, d_model), jnp.float32)
                  * jnp.sqrt(2.0 / (n_head * d_v + d_model)),
        "fc_b": jax.random.normal(ks[6], (1, d_model), jnp.float32) * 0.01,
        # LayerNorm(d_model) defaults
        "ln_g": jnp.ones((1, d_model), jnp.float32),
        "ln_b": jnp.zeros((1, d_model), jnp.float32),
    }

    q = jax.random.normal(ks[7], (sz_b, len_q, d_model), jnp.float32)
    k = jax.random.normal(ks[8], (sz_b, len_k, d_model), jnp.float32)
    v = jax.random.normal(ks[9], (sz_b, len_k, d_model), jnp.float32)
    mask = (jax.random.uniform(ks[10], (sz_b, len_q, len_k)) < 0.2).astype(jnp.float32)

    out, attn = map_based_mha(q, k, v, mask, params,
                              n_head=n_head, d_k=d_k, d_v=d_v)
    jax.block_until_ready((out, attn))

    out_ref, attn_ref = ref_mha(q, k, v, mask, params,
                                n_head=n_head, d_k=d_k, d_v=d_v)
    assert out.shape == (sz_b, len_q, d_model)
    assert attn.shape == (n_head * sz_b, len_q, len_k)
    # Exact-reciprocal softmax + exact (f32) weight-fold algebra -> tight tolerance.
    assert jnp.allclose(attn, attn_ref, rtol=2e-3, atol=2e-3)
    assert jnp.allclose(out, out_ref, rtol=2e-3, atol=2e-3)
    print("KERNEL_OK")
</pallas_src>

<mosaic_0001>
module attributes {stable_mosaic.version = 11 : i64} {
  func.func @kernel(%arg0: i32, %arg1: i32, %arg2: memref<1x8x32xf32, #tpu.memory_space<vmem>>, %arg3: memref<1x8x32xf32, #tpu.memory_space<vmem>>, %arg4: memref<1x8x32xf32, #tpu.memory_space<vmem>>, %arg5: memref<1x8x8xi8, #tpu.memory_space<vmem>>, %arg6: memref<2x32x2xf32, #tpu.memory_space<vmem>>, %arg7: memref<32x16xf32, #tpu.memory_space<vmem>>, %arg8: memref<16x32xf32, #tpu.memory_space<vmem>>, %arg9: memref<3x32xf32, #tpu.memory_space<vmem>>, %arg10: memref<1x8x32xf32, #tpu.memory_space<vmem>>, %arg11: memref<2x1x8x8xf32, #tpu.memory_space<vmem>>) attributes {dimension_semantics = [#tpu.dimension_semantics<parallel>, #tpu.dimension_semantics<parallel>], iteration_bounds = array<i64: 2, 1>, scalar_prefetch = 0 : i64, scratch_operands = 0 : i64, tpu.core_type = #tpu.core_type<tc>, window_params = [{transform_indices = @transform_0, window_bounds = array<i64: 1, 8, 32>}, {transform_indices = @transform_1, window_bounds = array<i64: 1, 8, 32>}, {transform_indices = @transform_2, window_bounds = array<i64: 1, 8, 32>}, {transform_indices = @transform_3, window_bounds = array<i64: 1, 8, 8>}, {pipeline_mode = #tpu.pipeline_mode<synchronous>, transform_indices = @transform_4, window_bounds = array<i64: 2, 32, 2>}, {pipeline_mode = #tpu.pipeline_mode<synchronous>, transform_indices = @transform_5, window_bounds = array<i64: 32, 16>}, {pipeline_mode = #tpu.pipeline_mode<synchronous>, transform_indices = @transform_6, window_bounds = array<i64: 16, 32>}, {pipeline_mode = #tpu.pipeline_mode<synchronous>, transform_indices = @transform_7, window_bounds = array<i64: 3, 32>}, {transform_indices = @transform_8, window_bounds = array<i64: 1, 8, 32>}, {transform_indices = @transform_9, window_bounds = array<i64: 2, 1, 8, 8>}]} {
    %c0 = arith.constant 0 : index
    %c0_0 = arith.constant 0 : index
    %c0_1 = arith.constant 0 : index
    %0 = vector.load %arg2[%c0, %c0_0, %c0_1] : memref<1x8x32xf32, #tpu.memory_space<vmem>>, vector<1x8x32xf32>
    %c0_2 = arith.constant 0 : index
    %c0_3 = arith.constant 0 : index
    %c0_4 = arith.constant 0 : index
    %1 = vector.load %arg3[%c0_2, %c0_3, %c0_4] : memref<1x8x32xf32, #tpu.memory_space<vmem>>, vector<1x8x32xf32>
    %c0_5 = arith.constant 0 : index
    %c0_6 = arith.constant 0 : index
    %c0_7 = arith.constant 0 : index
    %2 = vector.load %arg4[%c0_5, %c0_6, %c0_7] : memref<1x8x32xf32, #tpu.memory_space<vmem>>, vector<1x8x32xf32>
    %c0_8 = arith.constant 0 : index
    %c0_9 = arith.constant 0 : index
    %c0_10 = arith.constant 0 : index
    %3 = vector.load %arg5[%c0_8, %c0_9, %c0_10] : memref<1x8x8xi8, #tpu.memory_space<vmem>>, vector<1x8x8xi8>
    %4 = arith.sitofp %3 : vector<1x8x8xi8> to vector<1x8x8xf32>
    %cst = arith.constant 5.000000e-01 : f32
    %5 = vector.broadcast %cst : f32 to vector<1x8x8xf32>
    %6 = arith.cmpf ogt, %4, %5 : vector<1x8x8xf32>
    %7 = vector.shape_cast %0 : vector<1x8x32xf32> to vector<8x32xf32>
    %c0_11 = arith.constant 0 : index
    %c0_12 = arith.constant 0 : index
    %c0_13 = arith.constant 0 : index
    %8 = vector.load %arg6[%c0_11, %c0_12, %c0_13] : memref<2x32x2xf32, #tpu.memory_space<vmem>>, vector<1x32x2xf32>
    %9 = vector.shape_cast %8 : vector<1x32x2xf32> to vector<32x2xf32>
    %cst_14 = arith.constant dense<0.000000e+00> : vector<8x2xf32>
    %10 = tpu.matmul %7, %9, %cst_14 {dimension_numbers = #tpu.dot_dimension_numbers<[1], [0], [0], [1], [0, 0, 1, 1], [], []>} : vector<8x32xf32>, vector<32x2xf32>, vector<8x2xf32> -> vector<8x2xf32>
    %11 = vector.shape_cast %10 : vector<8x2xf32> to vector<1x8x2xf32>
    %12 = vector.shape_cast %1 : vector<1x8x32xf32> to vector<8x32xf32>
    %c1 = arith.constant 1 : index
    %c0_15 = arith.constant 0 : index
    %c0_16 = arith.constant 0 : index
    %13 = vector.load %arg6[%c1, %c0_15, %c0_16] : memref<2x32x2xf32, #tpu.memory_space<vmem>>, vector<1x32x2xf32>
    %14 = vector.shape_cast %13 : vector<1x32x2xf32> to vector<32x2xf32>
    %cst_17 = arith.constant dense<0.000000e+00> : vector<8x2xf32>
    %15 = tpu.matmul %12, %14, %cst_17 {dimension_numbers = #tpu.dot_dimension_numbers<[1], [0], [0], [1], [0, 0, 1, 1], [], []>} : vector<8x32xf32>, vector<32x2xf32>, vector<8x2xf32> -> vector<8x2xf32>
    %16 = vector.shape_cast %15 : vector<8x2xf32> to vector<1x8x2xf32>
    %17 = vector.shape_cast %2 : vector<1x8x32xf32> to vector<8x32xf32>
    %c0_18 = arith.constant 0 : index
    %c0_19 = arith.constant 0 : index
    %18 = vector.load %arg7[%c0_18, %c0_19] : memref<32x16xf32, #tpu.memory_space<vmem>>, vector<32x16xf32>
    %cst_20 = arith.constant dense<0.000000e+00> : vector<8x16xf32>
    %19 = tpu.matmul %17, %18, %cst_20 {dimension_numbers = #tpu.dot_dimension_numbers<[1], [0], [0], [1], [0, 0, 1, 1], [], []>} : vector<8x32xf32>, vector<32x16xf32>, vector<8x16xf32> -> vector<8x16xf32>
    %20 = vector.shape_cast %19 : vector<8x16xf32> to vector<1x8x16xf32>
    %21 = vector.extract_strided_slice %11 {offsets = [0, 0, 0], sizes = [1, 8, 1], strides = [1, 1, 1]} : vector<1x8x2xf32> to vector<1x8x1xf32>
    %22 = vector.shape_cast %21 : vector<1x8x1xf32> to vector<1x8xf32>
    %23 = vector.shape_cast %22 : vector<1x8xf32> to vector<1x8x1xf32>
    %24 = vector.extract_strided_slice %16 {offsets = [0, 0, 0], sizes = [1, 8, 1], strides = [1, 1, 1]} : vector<1x8x2xf32> to vector<1x8x1xf32>
    %25 = vector.shape_cast %24 : vector<1x8x1xf32> to vector<1x8xf32>
    %26 = vector.shape_cast %25 : vector<1x8xf32> to vector<1x1x8xf32>
    %27 = vector.broadcast %23 : vector<1x8x1xf32> to vector<1x8x8xf32>
    %28 = vector.broadcast %26 : vector<1x1x8xf32> to vector<1x8x8xf32>
    %29 = arith.addf %27, %28 : vector<1x8x8xf32>
    %cst_21 = arith.constant -1.000000e+10 : f32
    %30 = vector.broadcast %cst_21 : f32 to vector<1x8x8xf32>
    %31 = arith.select %6, %30, %29 : vector<1x8x8xi1>, vector<1x8x8xf32>
    %cst_22 = arith.constant dense<0xFF800000> : vector<1x8xf32>
    %32 = vector.multi_reduction <maximumf>, %31, %cst_22 [2] : vector<1x8x8xf32> to vector<1x8xf32>
    %33 = vector.shape_cast %32 : vector<1x8xf32> to vector<1x8x1xf32>
    %34 = vector.broadcast %33 : vector<1x8x1xf32> to vector<1x8x8xf32>
    %35 = arith.subf %31, %34 : vector<1x8x8xf32>
    %36 = math.exp %35 : vector<1x8x8xf32>
    %cst_23 = arith.constant dense<0.000000e+00> : vector<1x8xf32>
    %37 = vector.multi_reduction <add>, %36, %cst_23 [2] : vector<1x8x8xf32> to vector<1x8xf32>
    %38 = vector.shape_cast %37 : vector<1x8xf32> to vector<1x8x1xf32>
    %cst_24 = arith.constant 1.000000e+00 : f32
    %39 = vector.broadcast %cst_24 : f32 to vector<1x8x1xf32>
    %40 = arith.divf %39, %38 : vector<1x8x1xf32>
    %41 = vector.broadcast %40 : vector<1x8x1xf32> to vector<1x8x8xf32>
    %42 = arith.mulf %36, %41 : vector<1x8x8xf32>
    %c0_25 = arith.constant 0 : index
    %c0_26 = arith.constant 0 : index
    %c0_27 = arith.constant 0 : index
    %c0_28 = arith.constant 0 : index
    %43 = vector.load %arg11[%c0_25, %c0_26, %c0_27, %c0_28] : memref<2x1x8x8xf32, #tpu.memory_space<vmem>>, vector<1x1x8x8xf32>
    %44 = vector.shape_cast %43 : vector<1x1x8x8xf32> to vector<1x8x8xf32>
    %45 = vector.shape_cast %42 : vector<1x8x8xf32> to vector<1x1x8x8xf32>
    tpu.vector_store %arg11[%c0_25, %c0_26, %c0_27, %c0_28], %45 {strides = array<i32>} : memref<2x1x8x8xf32, #tpu.memory_space<vmem>>, vector<1x1x8x8xf32>,
    %46 = vector.extract_strided_slice %20 {offsets = [0, 0, 0], sizes = [1, 8, 8], strides = [1, 1, 1]} : vector<1x8x16xf32> to vector<1x8x8xf32>
    "tpu.trace_start"() <{level = 10 : i32, message = "bqk,bkd->bqd"}> : () -> ()
    %cst_29 = arith.constant dense<0.000000e+00> : vector<1x8x8xf32>
    %47 = tpu.matmul %42, %46, %cst_29 {dimension_numbers = #tpu.dot_dimension_numbers<[2], [1], [1], [2], [0, 0, 0, 1, 1, 2], [0], [0]>} : vector<1x8x8xf32>, vector<1x8x8xf32>, vector<1x8x8xf32> -> vector<1x8x8xf32>
    "tpu.trace_stop"() : () -> ()
    %48 = vector.extract_strided_slice %11 {offsets = [0, 0, 1], sizes = [1, 8, 1], strides = [1, 1, 1]} : vector<1x8x2xf32> to vector<1x8x1xf32>
    %49 = vector.shape_cast %48 : vector<1x8x1xf32> to vector<1x8xf32>
    %50 = vector.shape_cast %49 : vector<1x8xf32> to vector<1x8x1xf32>
    %51 = vector.extract_strided_slice %16 {offsets = [0, 0, 1], sizes = [1, 8, 1], strides = [1, 1, 1]} : vector<1x8x2xf32> to vector<1x8x1xf32>
    %52 = vector.shape_cast %51 : vector<1x8x1xf32> to vector<1x8xf32>
    %53 = vector.shape_cast %52 : vector<1x8xf32> to vector<1x1x8xf32>
    %54 = vector.broadcast %50 : vector<1x8x1xf32> to vector<1x8x8xf32>
    %55 = vector.broadcast %53 : vector<1x1x8xf32> to vector<1x8x8xf32>
    %56 = arith.addf %54, %55 : vector<1x8x8xf32>
    %cst_30 = arith.constant -1.000000e+10 : f32
    %57 = vector.broadcast %cst_30 : f32 to vector<1x8x8xf32>
    %58 = arith.select %6, %57, %56 : vector<1x8x8xi1>, vector<1x8x8xf32>
    %cst_31 = arith.constant dense<0xFF800000> : vector<1x8xf32>
    %59 = vector.multi_reduction <maximumf>, %58, %cst_31 [2] : vector<1x8x8xf32> to vector<1x8xf32>
    %60 = vector.shape_cast %59 : vector<1x8xf32> to vector<1x8x1xf32>
    %61 = vector.broadcast %60 : vector<1x8x1xf32> to vector<1x8x8xf32>
    %62 = arith.subf %58, %61 : vector<1x8x8xf32>
    %63 = math.exp %62 : vector<1x8x8xf32>
    %cst_32 = arith.constant dense<0.000000e+00> : vector<1x8xf32>
    %64 = vector.multi_reduction <add>, %63, %cst_32 [2] : vector<1x8x8xf32> to vector<1x8xf32>
    %65 = vector.shape_cast %64 : vector<1x8xf32> to vector<1x8x1xf32>
    %cst_33 = arith.constant 1.000000e+00 : f32
    %66 = vector.broadcast %cst_33 : f32 to vector<1x8x1xf32>
    %67 = arith.divf %66, %65 : vector<1x8x1xf32>
    %68 = vector.broadcast %67 : vector<1x8x1xf32> to vector<1x8x8xf32>
    %69 = arith.mulf %63, %68 : vector<1x8x8xf32>
    %c1_34 = arith.constant 1 : index
    %c0_35 = arith.constant 0 : index
    %c0_36 = arith.constant 0 : index
    %c0_37 = arith.constant 0 : index
    %70 = vector.load %arg11[%c1_34, %c0_35, %c0_36, %c0_37] : memref<2x1x8x8xf32, #tpu.memory_space<vmem>>, vector<1x1x8x8xf32>
    %71 = vector.shape_cast %70 : vector<1x1x8x8xf32> to vector<1x8x8xf32>
    %72 = vector.shape_cast %69 : vector<1x8x8xf32> to vector<1x1x8x8xf32>
    tpu.vector_store %arg11[%c1_34, %c0_35, %c0_36, %c0_37], %72 {strides = array<i32>} : memref<2x1x8x8xf32, #tpu.memory_space<vmem>>, vector<1x1x8x8xf32>,
    %73 = vector.extract_strided_slice %20 {offsets = [0, 0, 8], sizes = [1, 8, 8], strides = [1, 1, 1]} : vector<1x8x16xf32> to vector<1x8x8xf32>
    "tpu.trace_start"() <{level = 10 : i32, message = "bqk,bkd->bqd"}> : () -> ()
    %cst_38 = arith.constant dense<0.000000e+00> : vector<1x8x8xf32>
    %74 = tpu.matmul %69, %73, %cst_38 {dimension_numbers = #tpu.dot_dimension_numbers<[2], [1], [1], [2], [0, 0, 0, 1, 1, 2], [0], [0]>} : vector<1x8x8xf32>, vector<1x8x8xf32>, vector<1x8x8xf32> -> vector<1x8x8xf32>
    "tpu.trace_stop"() : () -> ()
    %75 = tpu.concatenate %47, %74 in 2 : vector<1x8x8xf32>, vector<1x8x8xf32> -> vector<1x8x16xf32>
    %76 = vector.shape_cast %75 : vector<1x8x16xf32> to vector<8x16xf32>
    %c0_39 = arith.constant 0 : index
    %c0_40 = arith.constant 0 : index
    %77 = vector.load %arg8[%c0_39, %c0_40] : memref<16x32xf32, #tpu.memory_space<vmem>>, vector<16x32xf32>
    %cst_41 = arith.constant dense<0.000000e+00> : vector<8x32xf32>
    %78 = tpu.matmul %76, %77, %cst_41 {dimension_numbers = #tpu.dot_dimension_numbers<[1], [0], [0], [1], [0, 0, 1, 1], [], []>} : vector<8x16xf32>, vector<16x32xf32>, vector<8x32xf32> -> vector<8x32xf32>
    %c0_42 = arith.constant 0 : index
    %c0_43 = arith.constant 0 : index
    %79 = vector.load %arg9[%c0_42, %c0_43] : memref<3x32xf32, #tpu.memory_space<vmem>>, vector<1x32xf32>
    %80 = vector.broadcast %79 : vector<1x32xf32> to vector<8x32xf32>
    %81 = arith.addf %78, %80 : vector<8x32xf32>
    %cst_44 = arith.constant 0.000000e+00 : f32
    %82 = vector.broadcast %cst_44 : f32 to vector<8x32xf32>
    %83 = arith.cmpf oge, %81, %82 : vector<8x32xf32>
    %cst_45 = arith.constant 2.000000e-01 : f32
    %84 = vector.broadcast %cst_45 : f32 to vector<8x32xf32>
    %85 = arith.mulf %84, %81 : vector<8x32xf32>
    %86 = arith.select %83, %81, %85 : vector<8x32xi1>, vector<8x32xf32>
    %87 = vector.shape_cast %86 : vector<8x32xf32> to vector<1x8x32xf32>
    %88 = arith.addf %87, %0 : vector<1x8x32xf32>
    %cst_46 = arith.constant dense<0.000000e+00> : vector<1x8xf32>
    %89 = vector.multi_reduction <add>, %88, %cst_46 [2] : vector<1x8x32xf32> to vector<1x8xf32>
    %90 = vector.shape_cast %89 : vector<1x8xf32> to vector<1x8x1xf32>
    %cst_47 = arith.constant 3.200000e+01 : f32
    %91 = vector.broadcast %cst_47 : f32 to vector<1x8x1xf32>
    %92 = arith.divf %90, %91 : vector<1x8x1xf32>
    %93 = vector.broadcast %92 : vector<1x8x1xf32> to vector<1x8x32xf32>
    %94 = arith.subf %88, %93 : vector<1x8x32xf32>
    %95 = arith.mulf %94, %94 : vector<1x8x32xf32>
    %cst_48 = arith.constant dense<0.000000e+00> : vector<1x8xf32>
    %96 = vector.multi_reduction <add>, %95, %cst_48 [2] : vector<1x8x32xf32> to vector<1x8xf32>
    %97 = vector.shape_cast %96 : vector<1x8xf32> to vector<1x8x1xf32>
    %cst_49 = arith.constant 3.200000e+01 : f32
    %98 = vector.broadcast %cst_49 : f32 to vector<1x8x1xf32>
    %99 = arith.divf %97, %98 : vector<1x8x1xf32>
    %100 = vector.broadcast %92 : vector<1x8x1xf32> to vector<1x8x32xf32>
    %101 = arith.subf %88, %100 : vector<1x8x32xf32>
    %cst_50 = arith.constant 9.99999974E-6 : f32
    %102 = vector.broadcast %cst_50 : f32 to vector<1x8x1xf32>
    %103 = arith.addf %99, %102 : vector<1x8x1xf32>
    %104 = math.rsqrt %103 : vector<1x8x1xf32>
    %105 = vector.broadcast %104 : vector<1x8x1xf32> to vector<1x8x32xf32>
    %106 = arith.mulf %101, %105 : vector<1x8x32xf32>
    %c1_51 = arith.constant 1 : index
    %c0_52 = arith.constant 0 : index
    %107 = vector.load %arg9[%c1_51, %c0_52] : memref<3x32xf32, #tpu.memory_space<vmem>>, vector<1x32xf32>
    %108 = vector.shape_cast %107 : vector<1x32xf32> to vector<1x1x32xf32>
    %109 = vector.broadcast %108 : vector<1x1x32xf32> to vector<1x8x32xf32>
    %110 = arith.mulf %106, %109 : vector<1x8x32xf32>
    %c2 = arith.constant 2 : index
    %c0_53 = arith.constant 0 : index
    %111 = vector.load %arg9[%c2, %c0_53] : memref<3x32xf32, #tpu.memory_space<vmem>>, vector<1x32xf32>
    %112 = vector.shape_cast %111 : vector<1x32xf32> to vector<1x1x32xf32>
    %113 = vector.broadcast %112 : vector<1x1x32xf32> to vector<1x8x32xf32>
    %114 = arith.addf %110, %113 : vector<1x8x32xf32>
    %c0_54 = arith.constant 0 : index
    %c0_55 = arith.constant 0 : index
    %c0_56 = arith.constant 0 : index
    %115 = vector.load %arg10[%c0_54, %c0_55, %c0_56] : memref<1x8x32xf32, #tpu.memory_space<vmem>>, vector<1x8x32xf32>
    tpu.vector_store %arg10[%c0_54, %c0_55, %c0_56], %114 {strides = array<i32>} : memref<1x8x32xf32, #tpu.memory_space<vmem>>, vector<1x8x32xf32>,
    return
  }
  func.func @transform_0(%arg0: i32, %arg1: i32) -> (i32, i32, i32) {
    %c0_i32 = arith.constant 0 : i32
    %c0_i32_0 = arith.constant 0 : i32
    return %arg0, %arg1, %c0_i32 : i32, i32, i32
  }
  func.func @transform_1(%arg0: i32, %arg1: i32) -> (i32, i32, i32) {
    %c0_i32 = arith.constant 0 : i32
    %c0_i32_0 = arith.constant 0 : i32
    %c0_i32_1 = arith.constant 0 : i32
    return %arg0, %c0_i32, %c0_i32_0 : i32, i32, i32
  }
  func.func @transform_2(%arg0: i32, %arg1: i32) -> (i32, i32, i32) {
    %c0_i32 = arith.constant 0 : i32
    %c0_i32_0 = arith.constant 0 : i32
    %c0_i32_1 = arith.constant 0 : i32
    return %arg0, %c0_i32, %c0_i32_0 : i32, i32, i32
  }
  func.func @transform_3(%arg0: i32, %arg1: i32) -> (i32, i32, i32) {
    %c0_i32 = arith.constant 0 : i32
    %c0_i32_0 = arith.constant 0 : i32
    return %arg0, %arg1, %c0_i32 : i32, i32, i32
  }
  func.func @transform_4(%arg0: i32, %arg1: i32) -> (i32, i32, i32) {
    %c0_i32 = arith.constant 0 : i32
    %c0_i32_0 = arith.constant 0 : i32
    %c0_i32_1 = arith.constant 0 : i32
    %c0_i32_2 = arith.constant 0 : i32
    return %c0_i32, %c0_i32_0, %c0_i32_1 : i32, i32, i32
  }
  func.func @transform_5(%arg0: i32, %arg1: i32) -> (i32, i32) {
    %c0_i32 = arith.constant 0 : i32
    %c0_i32_0 = arith.constant 0 : i32
    %c0_i32_1 = arith.constant 0 : i32
    return %c0_i32, %c0_i32_0 : i32, i32
  }
  func.func @transform_6(%arg0: i32, %arg1: i32) -> (i32, i32) {
    %c0_i32 = arith.constant 0 : i32
    %c0_i32_0 = arith.constant 0 : i32
    %c0_i32_1 = arith.constant 0 : i32
    return %c0_i32, %c0_i32_0 : i32, i32
  }
  func.func @transform_7(%arg0: i32, %arg1: i32) -> (i32, i32) {
    %c0_i32 = arith.constant 0 : i32
    %c0_i32_0 = arith.constant 0 : i32
    %c0_i32_1 = arith.constant 0 : i32
    return %c0_i32, %c0_i32_0 : i32, i32
  }
  func.func @transform_8(%arg0: i32, %arg1: i32) -> (i32, i32, i32) {
    %c0_i32 = arith.constant 0 : i32
    %c0_i32_0 = arith.constant 0 : i32
    return %arg0, %arg1, %c0_i32 : i32, i32, i32
  }
  func.func @transform_9(%arg0: i32, %arg1: i32) -> (i32, i32, i32, i32) {
    %c0_i32 = arith.constant 0 : i32
    %c0_i32_0 = arith.constant 0 : i32
    %c0_i32_1 = arith.constant 0 : i32
    return %c0_i32, %arg0, %arg1, %c0_i32_0 : i32, i32, i32, i32
  }
}

</mosaic_0001>

<llo_original>
// kernel: tpu_custom_call.1
$region0: #{tpu_custom_call.1}
  #allocation0 [shape = 'u32[]', space=smem, size = 0x4, offset = 0x4, fixed_abs, tag = 'smem constant byte address 0x4 - core index']
  #allocation1 [shape = 'u32[144,128]{1,0:T(1,128)}', space=vmem, size = 0x12000, scoped, tag = 'internal scratch']
  %s0 = inlined_call_operand.vmem [shape: f32[2,8,32], index: 0, kind: input, shape index: {}]
  %s1 = inlined_call_operand.vmem [shape: f32[2,8,32], index: 1, kind: input, shape index: {}]
  %s2 = inlined_call_operand.vmem [shape: f32[2,8,32], index: 2, kind: input, shape index: {}]
  %s3 = inlined_call_operand.vmem [shape: s8[2,8,8], index: 3, kind: input, shape index: {}]
  %s4 = inlined_call_operand.vmem [shape: f32[2,32,2], index: 4, kind: input, shape index: {}]
  %s5 = inlined_call_operand.vmem [shape: f32[32,16], index: 5, kind: input, shape index: {}]
  %s6 = inlined_call_operand.vmem [shape: f32[16,32], index: 6, kind: input, shape index: {}]
  %s7 = inlined_call_operand.vmem [shape: f32[3,32], index: 7, kind: input, shape index: {}]
  %s8 = inlined_call_operand.hbm [shape: f32[2,8,32], index: 8, kind: output, shape index: {0}]
  %s9 = inlined_call_operand.hbm [shape: f32[2,2,8,8], index: 9, kind: output, shape index: {1}]
  %10 = xla_tuple %s8, %s9
  %s11 = sld [smem:[#allocation0]]
  $region73: #{tpu_custom_call.1} parent=0
    _
  %s13 = ssub.s32 1, %s11
  %s14 = scalar_select 0, %s13, %s11
  $region1: #{tpu_custom_call.1} parent=0
    #allocation2 [shape = 'u8[8192]{0}', space=vmem, size = 0x2000, scoped, tag = 'output window, operand 0']
    #allocation3 [shape = 's32[2]{0}', space=sflag, size = 0x8, scoped, tag = 'scoped memory for tpu_custom_call.1']
    #allocation4 [shape = 'u8[16384]{0}', space=vmem, size = 0x4000, scoped, tag = 'output window, operand 1']
    #allocation5 [shape = 's32[2]{0}', space=sflag, size = 0x8, scoped, tag = 'scoped memory for tpu_custom_call.1']
    %15 = vsyncpa [#allocation3], 0
    %s16 = scalar_lea.sflag [#allocation3], 1
    %17 = vsyncpa %s16, 0
    %18 = vsyncpa [#allocation5], 0
    %s19 = scalar_lea.sflag [#allocation5], 1
    %20 = vsyncpa %s19, 0
    loop: start=0, step=1, limit=4
    $region2: #{tpu_custom_call.1} parent=1 // loop_pre_header
      _
    $region3: #{tpu_custom_call.1} parent=1 // loop_header
      %s22 = sphi 0, %s26
      %p23 = scmp.ge.s32.totalorder %s22, 4
      %s29 = sphi 0, %s41
      %s30 = sphi 0, %s37
      %s31 = sphi 0, %s29
      %s32 = sphi 0, %s30
      %s33 = sphi 0, %s31
      %s34 = sphi 0, %s32
      %s46 = sphi 0, %s48
      %s49 = sphi 0, %s46
      %s50 = sphi 0, %s49
      %s66 = sphi 0, %s50
      %s72 = sphi 0, %s74
      %s75 = sphi 0, %s72
      %s76 = sphi 0, %s75
      %s92 = sphi 0, %s76
      %s98 = sphi 0, %s100
      %s101 = sphi 0, %s98
      %s102 = sphi 0, %s101
      %s118 = sphi 0, %s102
      %s126 = sphi 0, %s128
      %s129 = sphi 0, %s126
      %s130 = sphi 0, %s129
      %s146 = sphi 0, %s130
      %s150 = sphi 0, %s150
      %s152 = sphi 0, %s150
      %s153 = sphi 0, %s152
      %s167 = sphi 0, %s153
      %s171 = sphi 0, %s171
      %s173 = sphi 0, %s171
      %s174 = sphi 0, %s173
      %s188 = sphi 0, %s174
      %s192 = sphi 0, %s192
      %s194 = sphi 0, %s192
      %s195 = sphi 0, %s194
      %s209 = sphi 0, %s195
      %s213 = sphi 0, %s213
      %s215 = sphi 0, %s213
      %s216 = sphi 0, %s215
      %s230 = sphi 0, %s216
      %s238 = sphi 0, %s240
      %s241 = sphi 0, %s238
      %s242 = sphi 0, %s241
      %s258 = sphi 0, %s242
      %s266 = sphi 0, %s268
      %s269 = sphi 0, %s266
      %s270 = sphi 0, %s269
      %s286 = sphi 0, %s270
    $region4: #{tpu_custom_call.1} parent=1 // loop_header_branch
      %25 = sbr.rel (%p23) target = $region8
    $region5: #{tpu_custom_call.1} parent=1 // loop_body
      %s27 = ssub.s32 %s22, 1
      %s28 = ssub.s32 %s22, 2
      %s35 = sadd.s32 1, %s30
      %p36 = scmp.ge.s32.totalorder %s35, 1
      %s37 = scalar_select %p36, 0, %s35
      %s38 = sadd.s32 1, %s29
      %s39 = scalar_select %p36, %s38, %s29
      %p40 = scmp.ge.s32.totalorder %s39, 2
      %s41 = scalar_select %p40, 0, %s39
      %s42 = ssub.s32 %s29, %s41
      %s43 = ssub.s32 %s30, %s37
      %s44 = sor.u32 %s42, %s43
      %p45 = scmp.eq.s32.totalorder %s44, 0
      %s47 = sadd.s32 %s46, 1
      %s48 = scalar_select %p45, %s46, %s47
      %p51 = pneg %p45
      %p52 = scmp.eq.s32.totalorder %s22, 1
      %p53 = por %p51, %p52
      %p54 = scmp.ne.s32.totalorder %s46, %s49
      %p55 = scmp.eq.s32.totalorder %s22, 0
      %p56 = por %p54, %p55
      %p57 = scmp.ne.s32.totalorder %s46, %s49
      %p58 = scmp.eq.s32.totalorder %s27, 1
      %p59 = por %p57, %p58
      %p60 = scmp.ne.s32.totalorder %s49, %s50
      %p61 = scmp.eq.s32.totalorder %s27, 0
      %p62 = por %p60, %p61
      %p63 = scmp.ne.s32.totalorder %s49, %s50
      %p64 = scmp.eq.s32.totalorder %s28, 1
      %p65 = por %p63, %p64
      %p67 = scmp.ne.s32.totalorder %s50, %s66
      %p68 = scmp.eq.s32.totalorder %s28, 0
      %p69 = por %p67, %p68
      %s70 = ssub.s32 %s29, %s41
      %p71 = scmp.eq.s32.totalorder %s70, 0
      %s73 = sadd.s32 %s72, 1
      %s74 = scalar_select %p71, %s72, %s73
      %p77 = pneg %p71
      %p78 = scmp.eq.s32.totalorder %s22, 1
      %p79 = por %p77, %p78
      %p80 = scmp.ne.s32.totalorder %s72, %s75
      %p81 = scmp.eq.s32.totalorder %s22, 0
      %p82 = por %p80, %p81
      %p83 = scmp.ne.s32.totalorder %s72, %s75
      %p84 = scmp.eq.s32.totalorder %s27, 1
      %p85 = por %p83, %p84
      %p86 = scmp.ne.s32.totalorder %s75, %s76
      %p87 = scmp.eq.s32.totalorder %s27, 0
      %p88 = por %p86, %p87
      %p89 = scmp.ne.s32.totalorder %s75, %s76
      %p90 = scmp.eq.s32.totalorder %s28, 1
      %p91 = por %p89, %p90
      %p93 = scmp.ne.s32.totalorder %s76, %s92
      %p94 = scmp.eq.s32.totalorder %s28, 0
      %p95 = por %p93, %p94
      %s96 = ssub.s32 %s29, %s41
      %p97 = scmp.eq.s32.totalorder %s96, 0
      %s99 = sadd.s32 %s98, 1
      %s100 = scalar_select %p97, %s98, %s99
      %p103 = pneg %p97
      %p104 = scmp.eq.s32.totalorder %s22, 1
      %p105 = por %p103, %p104
      %p106 = scmp.ne.s32.totalorder %s98, %s101
      %p107 = scmp.eq.s32.totalorder %s22, 0
      %p108 = por %p106, %p107
      %p109 = scmp.ne.s32.totalorder %s98, %s101
      %p110 = scmp.eq.s32.totalorder %s27, 1
      %p111 = por %p109, %p110
      %p112 = scmp.ne.s32.totalorder %s101, %s102
      %p113 = scmp.eq.s32.totalorder %s27, 0
      %p114 = por %p112, %p113
      %p115 = scmp.ne.s32.totalorder %s101, %s102
      %p116 = scmp.eq.s32.totalorder %s28, 1
      %p117 = por %p115, %p116
      %p119 = scmp.ne.s32.totalorder %s102, %s118
      %p120 = scmp.eq.s32.totalorder %s28, 0
      %p121 = por %p119, %p120
      %s122 = ssub.s32 %s29, %s41
      %s123 = ssub.s32 %s30, %s37
      %s124 = sor.u32 %s122, %s123
      %p125 = scmp.eq.s32.totalorder %s124, 0
      %s127 = sadd.s32 %s126, 1
      %s128 = scalar_select %p125, %s126, %s127
      %p131 = pneg %p125
      %p132 = scmp.eq.s32.totalorder %s22, 1
      %p133 = por %p131, %p132
      %p134 = scmp.ne.s32.totalorder %s126, %s129
      %p135 = scmp.eq.s32.totalorder %s22, 0
      %p136 = por %p134, %p135
      %p137 = scmp.ne.s32.totalorder %s126, %s129
      %p138 = scmp.eq.s32.totalorder %s27, 1
      %p139 = por %p137, %p138
      %p140 = scmp.ne.s32.totalorder %s129, %s130
      %p141 = scmp.eq.s32.totalorder %s27, 0
      %p142 = por %p140, %p141
      %p143 = scmp.ne.s32.totalorder %s129, %s130
      %p144 = scmp.eq.s32.totalorder %s28, 1
      %p145 = por %p143, %p144
      %p147 = scmp.ne.s32.totalorder %s130, %s146
      %p148 = scmp.eq.s32.totalorder %s28, 0
      %p149 = por %p147, %p148
      %s151 = sadd.s32 %s150, 1
      %p154 = scmp.eq.s32.totalorder %s22, 1
      %p155 = scmp.ne.s32.totalorder %s150, %s152
      %p156 = scmp.eq.s32.totalorder %s22, 0
      %p157 = por %p155, %p156
      %p158 = scmp.ne.s32.totalorder %s150, %s152
      %p159 = scmp.eq.s32.totalorder %s27, 1
      %p160 = por %p158, %p159
      %p161 = scmp.ne.s32.totalorder %s152, %s153
      %p162 = scmp.eq.s32.totalorder %s27, 0
      %p163 = por %p161, %p162
      %p164 = scmp.ne.s32.totalorder %s152, %s153
      %p165 = scmp.eq.s32.totalorder %s28, 1
      %p166 = por %p164, %p165
      %p168 = scmp.ne.s32.totalorder %s153, %s167
      %p169 = scmp.eq.s32.totalorder %s28, 0
      %p170 = por %p168, %p169
      %s172 = sadd.s32 %s171, 1
      %p175 = scmp.eq.s32.totalorder %s22, 1
      %p176 = scmp.ne.s32.totalorder %s171, %s173
      %p177 = scmp.eq.s32.totalorder %s22, 0
      %p178 = por %p176, %p177
      %p179 = scmp.ne.s32.totalorder %s171, %s173
      %p180 = scmp.eq.s32.totalorder %s27, 1
      %p181 = por %p179, %p180
      %p182 = scmp.ne.s32.totalorder %s173, %s174
      %p183 = scmp.eq.s32.totalorder %s27, 0
      %p184 = por %p182, %p183
      %p185 = scmp.ne.s32.totalorder %s173, %s174
      %p186 = scmp.eq.s32.totalorder %s28, 1
      %p187 = por %p185, %p186
      %p189 = scmp.ne.s32.totalorder %s174, %s188
      %p190 = scmp.eq.s32.totalorder %s28, 0
      %p191 = por %p189, %p190
      %s193 = sadd.s32 %s192, 1
      %p196 = scmp.eq.s32.totalorder %s22, 1
      %p197 = scmp.ne.s32.totalorder %s192, %s194
      %p198 = scmp.eq.s32.totalorder %s22, 0
      %p199 = por %p197, %p198
      %p200 = scmp.ne.s32.totalorder %s192, %s194
      %p201 = scmp.eq.s32.totalorder %s27, 1
      %p202 = por %p200, %p201
      %p203 = scmp.ne.s32.totalorder %s194, %s195
      %p204 = scmp.eq.s32.totalorder %s27, 0
      %p205 = por %p203, %p204
      %p206 = scmp.ne.s32.totalorder %s194, %s195
      %p207 = scmp.eq.s32.totalorder %s28, 1
      %p208 = por %p206, %p207
      %p210 = scmp.ne.s32.totalorder %s195, %s209
      %p211 = scmp.eq.s32.totalorder %s28, 0
      %p212 = por %p210, %p211
      %s214 = sadd.s32 %s213, 1
      %p217 = scmp.eq.s32.totalorder %s22, 1
      %p218 = scmp.ne.s32.totalorder %s213, %s215
      %p219 = scmp.eq.s32.totalorder %s22, 0
      %p220 = por %p218, %p219
      %p221 = scmp.ne.s32.totalorder %s213, %s215
      %p222 = scmp.eq.s32.totalorder %s27, 1
      %p223 = por %p221, %p222
      %p224 = scmp.ne.s32.totalorder %s215, %s216
      %p225 = scmp.eq.s32.totalorder %s27, 0
      %p226 = por %p224, %p225
      %p227 = scmp.ne.s32.totalorder %s215, %s216
      %p228 = scmp.eq.s32.totalorder %s28, 1
      %p229 = por %p227, %p228
      %p231 = scmp.ne.s32.totalorder %s216, %s230
      %p232 = scmp.eq.s32.totalorder %s28, 0
      %p233 = por %p231, %p232
      %s234 = ssub.s32 %s29, %s41
      %s235 = ssub.s32 %s30, %s37
      %s236 = sor.u32 %s234, %s235
      %p237 = scmp.eq.s32.totalorder %s236, 0
      %s239 = sadd.s32 %s238, 1
      %s240 = scalar_select %p237, %s238, %s239
      %p243 = pneg %p237
      %p244 = scmp.eq.s32.totalorder %s22, 1
      %p245 = por %p243, %p244
      %p246 = scmp.ne.s32.totalorder %s238, %s241
      %p247 = scmp.eq.s32.totalorder %s22, 0
      %p248 = por %p246, %p247
      %p249 = scmp.ne.s32.totalorder %s238, %s241
      %p250 = scmp.eq.s32.totalorder %s27, 1
      %p251 = por %p249, %p250
      %p252 = scmp.ne.s32.totalorder %s241, %s242
      %p253 = scmp.eq.s32.totalorder %s27, 0
      %p254 = por %p252, %p253
      %p255 = scmp.ne.s32.totalorder %s241, %s242
      %p256 = scmp.eq.s32.totalorder %s28, 1
      %p257 = por %p255, %p256
      %p259 = scmp.ne.s32.totalorder %s242, %s258
      %p260 = scmp.eq.s32.totalorder %s28, 0
      %p261 = por %p259, %p260
      %s262 = ssub.s32 %s29, %s41
      %s263 = ssub.s32 %s30, %s37
      %s264 = sor.u32 %s262, %s263
      %p265 = scmp.eq.s32.totalorder %s264, 0
      %s267 = sadd.s32 %s266, 1
      %s268 = scalar_select %p265, %s266, %s267
      %p271 = pneg %p265
      %p272 = scmp.eq.s32.totalorder %s22, 1
      %p273 = por %p271, %p272
      %p274 = scmp.ne.s32.totalorder %s266, %s269
      %p275 = scmp.eq.s32.totalorder %s22, 0
      %p276 = por %p274, %p275
      %p277 = scmp.ne.s32.totalorder %s266, %s269
      %p278 = scmp.eq.s32.totalorder %s27, 1
      %p279 = por %p277, %p278
      %p280 = scmp.ne.s32.totalorder %s269, %s270
      %p281 = scmp.eq.s32.totalorder %s27, 0
      %p282 = por %p280, %p281
      %p283 = scmp.ne.s32.totalorder %s269, %s270
      %p284 = scmp.eq.s32.totalorder %s28, 1
      %p285 = por %p283, %p284
      %p287 = scmp.ne.s32.totalorder %s270, %s286
      %p288 = scmp.eq.s32.totalorder %s28, 0
      %p289 = por %p287, %p288
      %p290 = scmp.le.s32.totalorder 1, %s22
      %p291 = scmp.lt.s32.totalorder %s22, 3
      %p292 = pnand %p290, %p291
      %p293 = pneg %p292
      // Predicated region
      $region9: #{tpu_custom_call.1} parent=5 // pred_check
        _
      $region10: #{tpu_custom_call.1} parent=5 // pred_check_branch
        %295 = sbr.rel (%p292) target = $region12
      $region11: #{tpu_custom_call.1} parent=5 // pred_region
        %s296 = ssub.s32 %s22, 1
        // Predicated region
        $region13: #{tpu_custom_call.1} parent=11 // pred_check
          %p297 = pneg %p163
        $region14: #{tpu_custom_call.1} parent=11 // pred_check_branch
          %299 = sbr.rel (%p297) target = $region16
        $region15: #{tpu_custom_call.1} parent=11 // pred_region
          _
        $region16: #{tpu_custom_call.1} parent=11 // pred_fallthru
          _
        // Predicated region
        $region17: #{tpu_custom_call.1} parent=11 // pred_check
          %p300 = pneg %p184
        $region18: #{tpu_custom_call.1} parent=11 // pred_check_branch
          %302 = sbr.rel (%p300) target = $region20
        $region19: #{tpu_custom_call.1} parent=11 // pred_region
          _
        $region20: #{tpu_custom_call.1} parent=11 // pred_fallthru
          _
        // Predicated region
        $region21: #{tpu_custom_call.1} parent=11 // pred_check
          %p303 = pneg %p205
        $region22: #{tpu_custom_call.1} parent=11 // pred_check_branch
          %305 = sbr.rel (%p303) target = $region24
        $region23: #{tpu_custom_call.1} parent=11 // pred_region
          _
        $region24: #{tpu_custom_call.1} parent=11 // pred_fallthru
          _
        // Predicated region
        $region25: #{tpu_custom_call.1} parent=11 // pred_check
          %p306 = pneg %p226
        $region26: #{tpu_custom_call.1} parent=11 // pred_check_branch
          %308 = sbr.rel (%p306) target = $region28
        $region27: #{tpu_custom_call.1} parent=11 // pred_region
          _
        $region28: #{tpu_custom_call.1} parent=11 // pred_fallthru
          _
      $region12: #{tpu_custom_call.1} parent=5 // pred_fallthru
        _
      %p309 = scmp.lt.s32.totalorder %s22, 2
      // Predicated region
      $region29: #{tpu_custom_call.1} parent=5 // pred_check
        %p310 = pneg %p309
      $region30: #{tpu_custom_call.1} parent=5 // pred_check_branch
        %312 = sbr.rel (%p310) target = $region32
      $region31: #{tpu_custom_call.1} parent=5 // pred_region
        // Predicated region
        $region33: #{tpu_custom_call.1} parent=31 // pred_check
          %p313 = pneg %p56
        $region34: #{tpu_custom_call.1} parent=31 // pred_check_branch
          %315 = sbr.rel (%p313) target = $region36
        $region35: #{tpu_custom_call.1} parent=31 // pred_region
          %p316 = scmp.lt.s32.totalorder %s29, 1
          %s317 = scalar_select %p316, %s29, 1
          %p318 = scmp.lt.s32.totalorder %s30, 0
          %s319 = scalar_select %p318, %s30, 0
          %s320 = sadd.s32 %s319, %s317
          %s321 = smul.addr %s320, 8
          %s322 = scalar_lea.vmem %s0, %s321
        $region36: #{tpu_custom_call.1} parent=31 // pred_fallthru
          _
        // Predicated region
        $region37: #{tpu_custom_call.1} parent=31 // pred_check
          %p323 = pneg %p82
        $region38: #{tpu_custom_call.1} parent=31 // pred_check_branch
          %325 = sbr.rel (%p323) target = $region40
        $region39: #{tpu_custom_call.1} parent=31 // pred_region
          %p326 = scmp.lt.s32.totalorder %s29, 1
          %s327 = scalar_select %p326, %s29, 1
          %s328 = smul.addr %s327, 8
          %s329 = scalar_lea.vmem %s1, %s328
        $region40: #{tpu_custom_call.1} parent=31 // pred_fallthru
          _
        // Predicated region
        $region41: #{tpu_custom_call.1} parent=31 // pred_check
          %p330 = pneg %p108
        $region42: #{tpu_custom_call.1} parent=31 // pred_check_branch
          %332 = sbr.rel (%p330) target = $region44
        $region43: #{tpu_custom_call.1} parent=31 // pred_region
          %p333 = scmp.lt.s32.totalorder %s29, 1
          %s334 = scalar_select %p333, %s29, 1
          %s335 = smul.addr %s334, 8
          %s336 = scalar_lea.vmem %s2, %s335
        $region44: #{tpu_custom_call.1} parent=31 // pred_fallthru
          _
        // Predicated region
        $region45: #{tpu_custom_call.1} parent=31 // pred_check
          %p337 = pneg %p136
        $region46: #{tpu_custom_call.1} parent=31 // pred_check_branch
          %339 = sbr.rel (%p337) target = $region48
        $region47: #{tpu_custom_call.1} parent=31 // pred_region
          %p340 = scmp.lt.s32.totalorder %s29, 1
          %s341 = scalar_select %p340, %s29, 1
          %p342 = scmp.lt.s32.totalorder %s30, 0
          %s343 = scalar_select %p342, %s30, 0
          %s344 = sadd.s32 %s343, %s341
          %s345 = smul.addr %s344, 2
          %s346 = scalar_lea.vmem %s3, %s345
        $region48: #{tpu_custom_call.1} parent=31 // pred_fallthru
          _
      $region32: #{tpu_custom_call.1} parent=5 // pred_fallthru
        _
      %p347 = scmp.le.s32.totalorder 1, %s22
      %p348 = scmp.lt.s32.totalorder %s22, 3
      %p349 = pnand %p347, %p348
      %p350 = pneg %p349
      // Predicated region
      $region49: #{tpu_custom_call.1} parent=5 // pred_check
        _
      $region50: #{tpu_custom_call.1} parent=5 // pred_check_branch
        %352 = sbr.rel (%p349) target = $region52
      $region51: #{tpu_custom_call.1} parent=5 // pred_region
        %s353 = ssub.s32 %s22, 1
        %p354 = scmp.lt.s32.totalorder %s31, 1
        %s355 = scalar_select %p354, %s31, 1
        %p356 = scmp.lt.s32.totalorder %s32, 0
        %s357 = scalar_select %p356, %s32, 0
        %s358 = sadd.s32 %s357, %s355
        %s359 = smul.addr %s358, 8
        %s360 = scalar_lea.vmem %s0, %s359
        %p361 = pneg %p62
        %p362 = pneg %p59
        %p363 = scmp.lt.s32.totalorder %s31, 1
        %s364 = scalar_select %p363, %s31, 1
        %s365 = smul.addr %s364, 8
        %s366 = scalar_lea.vmem %s1, %s365
        %p367 = pneg %p88
        %p368 = pneg %p85
        %p369 = scmp.lt.s32.totalorder %s31, 1
        %s370 = scalar_select %p369, %s31, 1
        %s371 = smul.addr %s370, 8
        %s372 = scalar_lea.vmem %s2, %s371
        %p373 = pneg %p114
        %p374 = pneg %p111
        %p375 = scmp.lt.s32.totalorder %s31, 1
        %s376 = scalar_select %p375, %s31, 1
        %p377 = scmp.lt.s32.totalorder %s32, 0
        %s378 = scalar_select %p377, %s32, 0
        %s379 = sadd.s32 %s378, %s376
        %s380 = smul.addr %s379, 2
        %s381 = scalar_lea.vmem %s3, %s380
        %p382 = pneg %p142
        %p383 = pneg %p139
        %p384 = pneg %p163
        %p385 = pneg %p160
        %p386 = pneg %p184
        %p387 = pneg %p181
        %p388 = pneg %p205
        %p389 = pneg %p202
        %p390 = pneg %p226
        %p391 = pneg %p223
        %p392 = pneg %p254
        %p393 = pneg %p251
        %s394 = sand.u32 %s241, 1
        %s395 = scalar_lea.sflag [#allocation3], %s394
        %s396 = sand.u32 %s241, 1
        %s397 = smul.addr %s396, 8
        %s398 = scalar_lea.vmem [#allocation2], %s397
        %p399 = pneg %p282
        %p400 = pneg %p279
        %s401 = sand.u32 %s269, 1
        %s402 = scalar_lea.sflag [#allocation5], %s401
        %s403 = sand.u32 %s269, 1
        %s404 = smul.addr %s403, 16
        %s405 = scalar_lea.vmem [#allocation4], %s404
        %p406 = scmp.lt.s32.totalorder %s31, 1
        %s407 = scalar_select %p406, %s31, 1
        %p408 = scmp.lt.s32.totalorder %s32, 0
        %s409 = scalar_select %p408, %s32, 0
        %s410 = sadd.s32 %s409, %s407
        %s411 = smul.addr %s410, 8
        %s412 = scalar_lea.vmem %s0, %s411
        %p413 = scmp.lt.s32.totalorder %s31, 1
        %s414 = scalar_select %p413, %s31, 1
        %s415 = smul.addr %s414, 8
        %s416 = scalar_lea.vmem %s1, %s415
        %p417 = scmp.lt.s32.totalorder %s31, 1
        %s418 = scalar_select %p417, %s31, 1
        %s419 = smul.addr %s418, 8
        %s420 = scalar_lea.vmem %s2, %s419
        %p421 = scmp.lt.s32.totalorder %s31, 1
        %s422 = scalar_select %p421, %s31, 1
        %p423 = scmp.lt.s32.totalorder %s32, 0
        %s424 = scalar_select %p423, %s32, 0
        %s425 = sadd.s32 %s424, %s422
        %s426 = smul.addr %s425, 2
        %s427 = scalar_lea.vmem %s3, %s426
        %v428 = vld [vmem:[%s412] sm:$0xff]
        %v429 = vld [vmem:[%s416] sm:$0xff]
        %v430 = vld [vmem:[%s420] sm:$0xff]
        %v431 = vld [vmem:[%s427] sm:$0x3]
        %v432 = vunpack.c.0.s8 %v431
        %v433 = vcvt.s32.f32 %v432
        %vm434 = vcmp.gt.f32.partialorder %v433, 0.5
        %v435 = vld [vmem:[%s4] sm:$0xff]
        %v436 = vld [vmem:[%s4 + $0x8] sm:$0xff]
        %v437 = vld [vmem:[%s4 + $0x10] sm:$0xff]
        %v438 = vld [vmem:[%s4 + $0x18] sm:$0xff]
        %vm439 = vcmask 261120
        %v441 = vsel %vm439, %v428, 0
        %443 = vmatprep.subr.mxu0 0.0
        %444 = vmatpush1.msra.mxu0 %v435
        %445 = vmatprep.subr.mxu0 0.0
        %446 = vmatpush1.msra.mxu0 %v436
        %447 = vmatprep.subr.mxu0 0.0
        %448 = vmatpush1.msra.mxu0 %v437
        %449 = vmatprep.subr.mxu0 0.0
        %450 = vmatpush1.msra.mxu0 %v438
        %451 = vmatprep.subr.mxu0 0.0
        %452 = vmatpush1.msra.mxu0 0.0
        %453 = vmatprep.subr.mxu0 0.0
        %454 = vmatpush1.msra.mxu0 0.0
        %455 = vmatprep.subr.mxu0 0.0
        %456 = vmatpush1.msra.mxu0 0.0
        %457 = vmatprep.subr.mxu0 0.0
        %458 = vmatpush1.msra.mxu0 0.0
        %459 = vmatprep.subr.mxu0 0.0
        %460 = vmatpush1.msra.mxu0 0.0
        %461 = vmatprep.subr.mxu0 0.0
        %462 = vmatpush1.msra.mxu0 0.0
        %463 = vmatprep.subr.mxu0 0.0
        %464 = vmatpush1.msra.mxu0 0.0
        %465 = vmatprep.subr.mxu0 0.0
        %466 = vmatpush1.msra.mxu0 0.0
        %467 = vmatprep.subr.mxu0 0.0
        %468 = vmatpush1.msra.mxu0 0.0
        %469 = vmatprep.subr.mxu0 0.0
        %470 = vmatpush1.msra.mxu0 0.0
        %471 = vmatprep.subr.mxu0 0.0
        %472 = vmatpush1.msra.mxu0 0.0
        %473 = vmatprep.subr.mxu0 0.0
        %474 = vmatpush1.msra.mxu0 0.0
        %475 = vmatprep.subr.mxu0 0.0
        %476 = vmatpush1.msra.mxu0 0.0
        %477 = vmatprep.subr.mxu0 0.0
        %478 = vmatpush1.msra.mxu0 0.0
        %479 = vmatprep.subr.mxu0 0.0
        %480 = vmatpush1.msra.mxu0 0.0
        %481 = vmatprep.subr.mxu0 0.0
        %482 = vmatpush1.msra.mxu0 0.0
        %483 = vmatprep.subr.mxu0 0.0
        %484 = vmatpush1.msra.mxu0 0.0
        %485 = vmatprep.subr.mxu0 0.0
        %486 = vmatpush1.msra.mxu0 0.0
        %487 = vmatprep.subr.mxu0 0.0
        %488 = vmatpush1.msra.mxu0 0.0
        %489 = vmatprep.subr.mxu0 0.0
        %490 = vmatpush1.msra.mxu0 0.0
        %491 = vmatprep.subr.mxu0 0.0
        %492 = vmatpush1.msra.mxu0 0.0
        %493 = vmatprep.subr.mxu0 0.0
        %494 = vmatpush1.msra.mxu0 0.0
        %495 = vmatprep.subr.mxu0 0.0
        %496 = vmatpush1.msra.mxu0 0.0
        %497 = vmatprep.subr.mxu0 0.0
        %498 = vmatpush1.msra.mxu0 0.0
        %499 = vmatprep.subr.mxu0 0.0
        %500 = vmatpush1.msra.mxu0 0.0
        %501 = vmatprep.subr.mxu0 0.0
        %502 = vmatpush1.msra.mxu0 0.0
        %503 = vmatprep.subr.mxu0 0.0
        %504 = vmatpush1.msra.mxu0 0.0
        %505 = vmatprep.subr.mxu0 0.0
        %506 = vmatpush1.msra.mxu0 0.0
        %507 = vmatprep.mubr.f32.mxu0 0.0
        %508 = vmatmul.mubr.f32.gmra.mrb[0].mxu0 %v441
        %v509 = vpop.f32.mrb[0].mxu0
        %v510 = vadd.f32 0.0, %v509
        %v511 = vpop.f32.mrb[0].mxu0
        %512 = vdwg.mxu0
        %s513 = scalar_lea.vmem %s4, 32
        %v514 = vld [vmem:[%s513] sm:$0xff]
        %v515 = vld [vmem:[%s513 + $0x8] sm:$0xff]
        %v516 = vld [vmem:[%s513 + $0x10] sm:$0xff]
        %v517 = vld [vmem:[%s513 + $0x18] sm:$0xff]
        %v519 = vsel %vm439, %v429, 0
        %521 = vmatprep.subr.mxu0 0.0
        %522 = vmatpush1.msra.mxu0 %v514
        %523 = vmatprep.subr.mxu0 0.0
        %524 = vmatpush1.msra.mxu0 %v515
        %525 = vmatprep.subr.mxu0 0.0
        %526 = vmatpush1.msra.mxu0 %v516
        %527 = vmatprep.subr.mxu0 0.0
        %528 = vmatpush1.msra.mxu0 %v517
        %529 = vmatprep.subr.mxu0 0.0
        %530 = vmatpush1.msra.mxu0 0.0
        %531 = vmatprep.subr.mxu0 0.0
        %532 = vmatpush1.msra.mxu0 0.0
        %533 = vmatprep.subr.mxu0 0.0
        %534 = vmatpush1.msra.mxu0 0.0
        %535 = vmatprep.subr.mxu0 0.0
        %536 = vmatpush1.msra.mxu0 0.0
        %537 = vmatprep.subr.mxu0 0.0
        %538 = vmatpush1.msra.mxu0 0.0
        %539 = vmatprep.subr.mxu0 0.0
        %540 = vmatpush1.msra.mxu0 0.0
        %541 = vmatprep.subr.mxu0 0.0
        %542 = vmatpush1.msra.mxu0 0.0
        %543 = vmatprep.subr.mxu0 0.0
        %544 = vmatpush1.msra.mxu0 0.0
        %545 = vmatprep.subr.mxu0 0.0
        %546 = vmatpush1.msra.mxu0 0.0
        %547 = vmatprep.subr.mxu0 0.0
        %548 = vmatpush1.msra.mxu0 0.0
        %549 = vmatprep.subr.mxu0 0.0
        %550 = vmatpush1.msra.mxu0 0.0
        %551 = vmatprep.subr.mxu0 0.0
        %552 = vmatpush1.msra.mxu0 0.0
        %553 = vmatprep.subr.mxu0 0.0
        %554 = vmatpush1.msra.mxu0 0.0
        %555 = vmatprep.subr.mxu0 0.0
        %556 = vmatpush1.msra.mxu0 0.0
        %557 = vmatprep.subr.mxu0 0.0
        %558 = vmatpush1.msra.mxu0 0.0
        %559 = vmatprep.subr.mxu0 0.0
        %560 = vmatpush1.msra.mxu0 0.0
        %561 = vmatprep.subr.mxu0 0.0
        %562 = vmatpush1.msra.mxu0 0.0
        %563 = vmatprep.subr.mxu0 0.0
        %564 = vmatpush1.msra.mxu0 0.0
        %565 = vmatprep.subr.mxu0 0.0
        %566 = vmatpush1.msra.mxu0 0.0
        %567 = vmatprep.subr.mxu0 0.0
        %568 = vmatpush1.msra.mxu0 0.0
        %569 = vmatprep.subr.mxu0 0.0
        %570 = vmatpush1.msra.mxu0 0.0
        %571 = vmatprep.subr.mxu0 0.0
        %572 = vmatpush1.msra.mxu0 0.0
        %573 = vmatprep.subr.mxu0 0.0
        %574 = vmatpush1.msra.mxu0 0.0
        %575 = vmatprep.subr.mxu0 0.0
        %576 = vmatpush1.msra.mxu0 0.0
        %577 = vmatprep.subr.mxu0 0.0
        %578 = vmatpush1.msra.mxu0 0.0
        %579 = vmatprep.subr.mxu0 0.0
        %580 = vmatpush1.msra.mxu0 0.0
        %581 = vmatprep.subr.mxu0 0.0
        %582 = vmatpush1.msra.mxu0 0.0
        %583 = vmatprep.subr.mxu0 0.0
        %584 = vmatpush1.msra.mxu0 0.0
        %585 = vmatprep.mubr.f32.mxu0 0.0
        %586 = vmatmul.mubr.f32.gmra.mrb[0].mxu0 %v519
        %v587 = vpop.f32.mrb[0].mxu0
        %v588 = vadd.f32 0.0, %v587
        %v589 = vpop.f32.mrb[0].mxu0
        %590 = vdwg.mxu0
        %v591 = vld [vmem:[%s5] sm:$0xff]
        %v592 = vld [vmem:[%s5 + $0x8] sm:$0xff]
        %v593 = vld [vmem:[%s5 + $0x10] sm:$0xff]
        %v594 = vld [vmem:[%s5 + $0x18] sm:$0xff]
        %v596 = vsel %vm439, %v430, 0
        %598 = vmatprep.subr.mxu0 0.0
        %599 = vmatpush1.msra.mxu0 %v591
        %600 = vmatprep.subr.mxu0 0.0
        %601 = vmatpush1.msra.mxu0 %v592
        %602 = vmatprep.subr.mxu0 0.0
        %603 = vmatpush1.msra.mxu0 %v593
        %604 = vmatprep.subr.mxu0 0.0
        %605 = vmatpush1.msra.mxu0 %v594
        %606 = vmatprep.subr.mxu0 0.0
        %607 = vmatpush1.msra.mxu0 0.0
        %608 = vmatprep.subr.mxu0 0.0
        %609 = vmatpush1.msra.mxu0 0.0
        %610 = vmatprep.subr.mxu0 0.0
        %611 = vmatpush1.msra.mxu0 0.0
        %612 = vmatprep.subr.mxu0 0.0
        %613 = vmatpush1.msra.mxu0 0.0
        %614 = vmatprep.subr.mxu0 0.0
        %615 = vmatpush1.msra.mxu0 0.0
        %616 = vmatprep.subr.mxu0 0.0
        %617 = vmatpush1.msra.mxu0 0.0
        %618 = vmatprep.subr.mxu0 0.0
        %619 = vmatpush1.msra.mxu0 0.0
        %620 = vmatprep.subr.mxu0 0.0
        %621 = vmatpush1.msra.mxu0 0.0
        %622 = vmatprep.subr.mxu0 0.0
        %623 = vmatpush1.msra.mxu0 0.0
        %624 = vmatprep.subr.mxu0 0.0
        %625 = vmatpush1.msra.mxu0 0.0
        %626 = vmatprep.subr.mxu0 0.0
        %627 = vmatpush1.msra.mxu0 0.0
        %628 = vmatprep.subr.mxu0 0.0
        %629 = vmatpush1.msra.mxu0 0.0
        %630 = vmatprep.subr.mxu0 0.0
        %631 = vmatpush1.msra.mxu0 0.0
        %632 = vmatprep.subr.mxu0 0.0
        %633 = vmatpush1.msra.mxu0 0.0
        %634 = vmatprep.subr.mxu0 0.0
        %635 = vmatpush1.msra.mxu0 0.0
        %636 = vmatprep.subr.mxu0 0.0
        %637 = vmatpush1.msra.mxu0 0.0
        %638 = vmatprep.subr.mxu0 0.0
        %639 = vmatpush1.msra.mxu0 0.0
        %640 = vmatprep.subr.mxu0 0.0
        %641 = vmatpush1.msra.mxu0 0.0
        %642 = vmatprep.subr.mxu0 0.0
        %643 = vmatpush1.msra.mxu0 0.0
        %644 = vmatprep.subr.mxu0 0.0
        %645 = vmatpush1.msra.mxu0 0.0
        %646 = vmatprep.subr.mxu0 0.0
        %647 = vmatpush1.msra.mxu0 0.0
        %648 = vmatprep.subr.mxu0 0.0
        %649 = vmatpush1.msra.mxu0 0.0
        %650 = vmatprep.subr.mxu0 0.0
        %651 = vmatpush1.msra.mxu0 0.0
        %652 = vmatprep.subr.mxu0 0.0
        %653 = vmatpush1.msra.mxu0 0.0
        %654 = vmatprep.subr.mxu0 0.0
        %655 = vmatpush1.msra.mxu0 0.0
        %656 = vmatprep.subr.mxu0 0.0
        %657 = vmatpush1.msra.mxu0 0.0
        %658 = vmatprep.subr.mxu0 0.0
        %659 = vmatpush1.msra.mxu0 0.0
        %660 = vmatprep.subr.mxu0 0.0
        %661 = vmatpush1.msra.mxu0 0.0
        %662 = vmatprep.mubr.f32.mxu0 0.0
        %663 = vmatmul.mubr.f32.gmra.mrb[0].mxu0 %v596
        %v664 = vpop.f32.mrb[0].mxu0
        %v665 = vadd.f32 0.0, %v664
        %v666 = vpop.f32.mrb[0].mxu0
        %667 = vdwg.mxu0
        %669 = vset.pattern.permute.xlu0 0
        %670 = vperm.xlu0 %669, %v510
        %v671 = vpop.permute.xlu0 %670
        %674 = vset.pattern.permute.xlu0 0
        %675 = vperm.xlu0 %674, %v588
        %v676 = vpop.permute.xlu0 %675
        %v677 = vlaneseq
        %v678 = vand.u32 %v677, 127
        %v679 = vlaneseq
        %v680 = vshrl.u32 %v679, 7
        %v681 = vsub.s32 %v678, %v680
        %v682 = vrot.slane %v676, %v681
        %vm683 = vcmask 1042434
        %v684 = vsel %vm683, %v682, %v682
        %vm685 = vcmask 1043459
        %v686 = vsel %vm685, %v682, %v684
        %vm687 = vcmask 1044484
        %v688 = vsel %vm687, %v682, %v686
        %vm689 = vcmask 1045509
        %v690 = vsel %vm689, %v682, %v688
        %vm691 = vcmask 1046534
        %v692 = vsel %vm691, %v682, %v690
        %vm693 = vcmask 1047559
        %v694 = vsel %vm693, %v682, %v692
        %v696 = vadd.f32 %v671, %v694
        %v697 = vsel %vm434, -1e+10, %v696
        %vm698 = vcmask 64512
        %v699 = vsel %vm698, %v697, -inf
        %700 = vmax.xlane.f32.xlu0 %v699
        %v701 = vpop.xlane.xlu0 %700
        %v702 = vsub.f32 %v697, %v701
        %v703 = vmul.f32 %v702, 1.442695
        %v704 = vpow.pop %v703
        %v705 = vsel %vm698, %v704, 0.0
        %706 = vadd.xlane.f32.xlu0 %v705
        %v707 = vpop.xlane.xlu0 %706
        %v708 = vrcp.pop %v707
        %v709 = vmul.f32 1.0, %v708
        %v710 = vmul.f32 %v704, %v709
        %711 = vst.msk [vmem:[%s405] sm:$0xff] %vm698, %v710
        %v713 = vsel %vm698, %v710, 0
        %715 = vmatprep.subr.mxu0 0.0
        %716 = vmatpush1.msra.mxu0 %v665
        %717 = vmatprep.subr.mxu0 0.0
        %718 = vmatpush1.msra.mxu0 0.0
        %719 = vmatprep.subr.mxu0 0.0
        %720 = vmatpush1.msra.mxu0 0.0
        %721 = vmatprep.subr.mxu0 0.0
        %722 = vmatpush1.msra.mxu0 0.0
        %723 = vmatprep.subr.mxu0 0.0
        %724 = vmatpush1.msra.mxu0 0.0
        %725 = vmatprep.subr.mxu0 0.0
        %726 = vmatpush1.msra.mxu0 0.0
        %727 = vmatprep.subr.mxu0 0.0
        %728 = vmatpush1.msra.mxu0 0.0
        %729 = vmatprep.subr.mxu0 0.0
        %730 = vmatpush1.msra.mxu0 0.0
        %731 = vmatprep.subr.mxu0 0.0
        %732 = vmatpush1.msra.mxu0 0.0
        %733 = vmatprep.subr.mxu0 0.0
        %734 = vmatpush1.msra.mxu0 0.0
        %735 = vmatprep.subr.mxu0 0.0
        %736 = vmatpush1.msra.mxu0 0.0
        %737 = vmatprep.subr.mxu0 0.0
        %738 = vmatpush1.msra.mxu0 0.0
        %739 = vmatprep.subr.mxu0 0.0
        %740 = vmatpush1.msra.mxu0 0.0
        %741 = vmatprep.subr.mxu0 0.0
        %742 = vmatpush1.msra.mxu0 0.0
        %743 = vmatprep.subr.mxu0 0.0
        %744 = vmatpush1.msra.mxu0 0.0
        %745 = vmatprep.subr.mxu0 0.0
        %746 = vmatpush1.msra.mxu0 0.0
        %747 = vmatprep.subr.mxu0 0.0
        %748 = vmatpush1.msra.mxu0 0.0
        %749 = vmatprep.subr.mxu0 0.0
        %750 = vmatpush1.msra.mxu0 0.0
        %751 = vmatprep.subr.mxu0 0.0
        %752 = vmatpush1.msra.mxu0 0.0
        %753 = vmatprep.subr.mxu0 0.0
        %754 = vmatpush1.msra.mxu0 0.0
        %755 = vmatprep.subr.mxu0 0.0
        %756 = vmatpush1.msra.mxu0 0.0
        %757 = vmatprep.subr.mxu0 0.0
        %758 = vmatpush1.msra.mxu0 0.0
        %759 = vmatprep.subr.mxu0 0.0
        %760 = vmatpush1.msra.mxu0 0.0
        %761 = vmatprep.subr.mxu0 0.0
        %762 = vmatpush1.msra.mxu0 0.0
        %763 = vmatprep.subr.mxu0 0.0
        %764 = vmatpush1.msra.mxu0 0.0
        %765 = vmatprep.subr.mxu0 0.0
        %766 = vmatpush1.msra.mxu0 0.0
        %767 = vmatprep.subr.mxu0 0.0
        %768 = vmatpush1.msra.mxu0 0.0
        %769 = vmatprep.subr.mxu0 0.0
        %770 = vmatpush1.msra.mxu0 0.0
        %771 = vmatprep.subr.mxu0 0.0
        %772 = vmatpush1.msra.mxu0 0.0
        %773 = vmatprep.subr.mxu0 0.0
        %774 = vmatpush1.msra.mxu0 0.0
        %775 = vmatprep.subr.mxu0 0.0
        %776 = vmatpush1.msra.mxu0 0.0
        %777 = vmatprep.subr.mxu0 0.0
        %778 = vmatpush1.msra.mxu0 0.0
        %779 = vmatprep.mubr.f32.mxu0 0.0
        %780 = vmatmul.mubr.f32.gmra.mrb[0].mxu0 %v713
        %v781 = vpop.f32.mrb[0].mxu0
        %v782 = vadd.f32 0.0, %v781
        %v783 = vpop.f32.mrb[0].mxu0
        %784 = vdwg.mxu0
        %785 = vset.pattern.permute.xlu0 1
        %786 = vperm.xlu0 %785, %v510
        %v787 = vpop.permute.xlu0 %786
        %789 = vset.pattern.permute.xlu0 1
        %790 = vperm.xlu0 %789, %v588
        %v791 = vpop.permute.xlu0 %790
        %v792 = vlaneseq
        %v793 = vshrl.u32 %v792, 7
        %v794 = vsub.s32 %v678, %v793
        %v795 = vrot.slane %v791, %v794
        %v796 = vsel %vm683, %v795, %v795
        %v797 = vsel %vm685, %v795, %v796
        %v798 = vsel %vm687, %v795, %v797
        %v799 = vsel %vm689, %v795, %v798
        %v800 = vsel %vm691, %v795, %v799
        %v801 = vsel %vm693, %v795, %v800
        %v803 = vadd.f32 %v787, %v801
        %v804 = vsel %vm434, -1e+10, %v803
        %v805 = vsel %vm698, %v804, -inf
        %806 = vmax.xlane.f32.xlu0 %v805
        %v807 = vpop.xlane.xlu0 %806
        %v808 = vsub.f32 %v804, %v807
        %v809 = vmul.f32 %v808, 1.442695
        %v810 = vpow.pop %v809
        %v811 = vsel %vm698, %v810, 0.0
        %812 = vadd.xlane.f32.xlu0 %v811
        %v813 = vpop.xlane.xlu0 %812
        %v814 = vrcp.pop %v813
        %v815 = vmul.f32 1.0, %v814
        %v816 = vmul.f32 %v810, %v815
        %s817 = scalar_lea.vmem %s405, 8 [#allocation4]
        %818 = vst.msk [vmem:[%s817] sm:$0xff] %vm698, %v816
        %820 = vrot.lane.b32.xlu0 %v665, 120
        %v821 = vpop.permute.xlu0 %820
        %v824 = vsel %vm698, %v816, 0
        %826 = vmatprep.subr.mxu0 0.0
        %827 = vmatpush1.msra.mxu0 %v821
        %828 = vmatprep.subr.mxu0 0.0
        %829 = vmatpush1.msra.mxu0 0.0
        %830 = vmatprep.subr.mxu0 0.0
        %831 = vmatpush1.msra.mxu0 0.0
        %832 = vmatprep.subr.mxu0 0.0
        %833 = vmatpush1.msra.mxu0 0.0
        %834 = vmatprep.subr.mxu0 0.0
        %835 = vmatpush1.msra.mxu0 0.0
        %836 = vmatprep.subr.mxu0 0.0
        %837 = vmatpush1.msra.mxu0 0.0
        %838 = vmatprep.subr.mxu0 0.0
        %839 = vmatpush1.msra.mxu0 0.0
        %840 = vmatprep.subr.mxu0 0.0
        %841 = vmatpush1.msra.mxu0 0.0
        %842 = vmatprep.subr.mxu0 0.0
        %843 = vmatpush1.msra.mxu0 0.0
        %844 = vmatprep.subr.mxu0 0.0
        %845 = vmatpush1.msra.mxu0 0.0
        %846 = vmatprep.subr.mxu0 0.0
        %847 = vmatpush1.msra.mxu0 0.0
        %848 = vmatprep.subr.mxu0 0.0
        %849 = vmatpush1.msra.mxu0 0.0
        %850 = vmatprep.subr.mxu0 0.0
        %851 = vmatpush1.msra.mxu0 0.0
        %852 = vmatprep.subr.mxu0 0.0
        %853 = vmatpush1.msra.mxu0 0.0
        %854 = vmatprep.subr.mxu0 0.0
        %855 = vmatpush1.msra.mxu0 0.0
        %856 = vmatprep.subr.mxu0 0.0
        %857 = vmatpush1.msra.mxu0 0.0
        %858 = vmatprep.subr.mxu0 0.0
        %859 = vmatpush1.msra.mxu0 0.0
        %860 = vmatprep.subr.mxu0 0.0
        %861 = vmatpush1.msra.mxu0 0.0
        %862 = vmatprep.subr.mxu0 0.0
        %863 = vmatpush1.msra.mxu0 0.0
        %864 = vmatprep.subr.mxu0 0.0
        %865 = vmatpush1.msra.mxu0 0.0
        %866 = vmatprep.subr.mxu0 0.0
        %867 = vmatpush1.msra.mxu0 0.0
        %868 = vmatprep.subr.mxu0 0.0
        %869 = vmatpush1.msra.mxu0 0.0
        %870 = vmatprep.subr.mxu0 0.0
        %871 = vmatpush1.msra.mxu0 0.0
        %872 = vmatprep.subr.mxu0 0.0
        %873 = vmatpush1.msra.mxu0 0.0
        %874 = vmatprep.subr.mxu0 0.0
        %875 = vmatpush1.msra.mxu0 0.0
        %876 = vmatprep.subr.mxu0 0.0
        %877 = vmatpush1.msra.mxu0 0.0
        %878 = vmatprep.subr.mxu0 0.0
        %879 = vmatpush1.msra.mxu0 0.0
        %880 = vmatprep.subr.mxu0 0.0
        %881 = vmatpush1.msra.mxu0 0.0
        %882 = vmatprep.subr.mxu0 0.0
        %883 = vmatpush1.msra.mxu0 0.0
        %884 = vmatprep.subr.mxu0 0.0
        %885 = vmatpush1.msra.mxu0 0.0
        %886 = vmatprep.subr.mxu0 0.0
        %887 = vmatpush1.msra.mxu0 0.0
        %888 = vmatprep.subr.mxu0 0.0
        %889 = vmatpush1.msra.mxu0 0.0
        %890 = vmatprep.mubr.f32.mxu0 0.0
        %891 = vmatmul.mubr.f32.gmra.mrb[0].mxu0 %v824
        %v892 = vpop.f32.mrb[0].mxu0
        %v893 = vadd.f32 0.0, %v892
        %v894 = vpop.f32.mrb[0].mxu0
        %895 = vdwg.mxu0
        %897 = vrot.lane.b32.xlu0 %v893, 8
        %v898 = vpop.permute.xlu0 %897
        %v900 = vsel %vm698, %v782, %v898
        %v901 = vld [vmem:[%s6] sm:$0xff]
        %v902 = vld [vmem:[%s6 + $0x8] sm:$0xff]
        %v903 = vld [vmem:[%s7] sm:$0x1]
        %v904 = vlaneseq
        %v905 = vshrl.u32 %v904, 7
        %v906 = vsub.s32 0, %v905
        %v907 = vrot.slane %v903, %v906
        %vm908 = vcmask 130048
        %v910 = vsel %vm908, %v900, 0
        %912 = vmatprep.subr.mxu0 0.0
        %913 = vmatpush1.msra.mxu0 %v901
        %914 = vmatprep.subr.mxu0 0.0
        %915 = vmatpush1.msra.mxu0 %v902
        %916 = vmatprep.subr.mxu0 0.0
        %917 = vmatpush1.msra.mxu0 0.0
        %918 = vmatprep.subr.mxu0 0.0
        %919 = vmatpush1.msra.mxu0 0.0
        %920 = vmatprep.subr.mxu0 0.0
        %921 = vmatpush1.msra.mxu0 0.0
        %922 = vmatprep.subr.mxu0 0.0
        %923 = vmatpush1.msra.mxu0 0.0
        %924 = vmatprep.subr.mxu0 0.0
        %925 = vmatpush1.msra.mxu0 0.0
        %926 = vmatprep.subr.mxu0 0.0
        %927 = vmatpush1.msra.mxu0 0.0
        %928 = vmatprep.subr.mxu0 0.0
        %929 = vmatpush1.msra.mxu0 0.0
        %930 = vmatprep.subr.mxu0 0.0
        %931 = vmatpush1.msra.mxu0 0.0
        %932 = vmatprep.subr.mxu0 0.0
        %933 = vmatpush1.msra.mxu0 0.0
        %934 = vmatprep.subr.mxu0 0.0
        %935 = vmatpush1.msra.mxu0 0.0
        %936 = vmatprep.subr.mxu0 0.0
        %937 = vmatpush1.msra.mxu0 0.0
        %938 = vmatprep.subr.mxu0 0.0
        %939 = vmatpush1.msra.mxu0 0.0
        %940 = vmatprep.subr.mxu0 0.0
        %941 = vmatpush1.msra.mxu0 0.0
        %942 = vmatprep.subr.mxu0 0.0
        %943 = vmatpush1.msra.mxu0 0.0
        %944 = vmatprep.subr.mxu0 0.0
        %945 = vmatpush1.msra.mxu0 0.0
        %946 = vmatprep.subr.mxu0 0.0
        %947 = vmatpush1.msra.mxu0 0.0
        %948 = vmatprep.subr.mxu0 0.0
        %949 = vmatpush1.msra.mxu0 0.0
        %950 = vmatprep.subr.mxu0 0.0
        %951 = vmatpush1.msra.mxu0 0.0
        %952 = vmatprep.subr.mxu0 0.0
        %953 = vmatpush1.msra.mxu0 0.0
        %954 = vmatprep.subr.mxu0 0.0
        %955 = vmatpush1.msra.mxu0 0.0
        %956 = vmatprep.subr.mxu0 0.0
        %957 = vmatpush1.msra.mxu0 0.0
        %958 = vmatprep.subr.mxu0 0.0
        %959 = vmatpush1.msra.mxu0 0.0
        %960 = vmatprep.subr.mxu0 0.0
        %961 = vmatpush1.msra.mxu0 0.0
        %962 = vmatprep.subr.mxu0 0.0
        %963 = vmatpush1.msra.mxu0 0.0
        %964 = vmatprep.subr.mxu0 0.0
        %965 = vmatpush1.msra.mxu0 0.0
        %966 = vmatprep.subr.mxu0 0.0
        %967 = vmatpush1.msra.mxu0 0.0
        %968 = vmatprep.subr.mxu0 0.0
        %969 = vmatpush1.msra.mxu0 0.0
        %970 = vmatprep.subr.mxu0 0.0
        %971 = vmatpush1.msra.mxu0 0.0
        %972 = vmatprep.subr.mxu0 0.0
        %973 = vmatpush1.msra.mxu0 0.0
        %974 = vmatprep.subr.mxu0 0.0
        %975 = vmatpush1.msra.mxu0 0.0
        %976 = vmatprep.mubr.f32.mxu0 0.0
        %977 = vmatmul.mubr.f32.gmra.mrb[0].mxu0 %v910
        %v978 = vpop.f32.mrb[0].mxu0
        %v979 = vadd.f32 %v907, %v978
        %v980 = vpop.f32.mrb[0].mxu0
        %981 = vdwg.mxu0
        %vm982 = vcmp.ge.f32.partialorder %v979, 0.0
        %v983 = vmul.f32 %v979, 0.2
        %v984 = vsel %vm982, %v979, %v983
        %v985 = vadd.f32 %v984, %v428
        %v986 = vsel %vm439, %v985, 0.0
        %987 = vadd.xlane.f32.xlu0 %v986
        %v988 = vpop.xlane.xlu0 %987
        %v989 = vrcp.pop 32.0
        %v990 = vmul.f32 %v988, %v989
        %v991 = vsub.f32 %v985, %v990
        %v992 = vmul.f32 %v991, %v991
        %v993 = vsel %vm439, %v992, 0.0
        %994 = vadd.xlane.f32.xlu0 %v993
        %v995 = vpop.xlane.xlu0 %994
        %v996 = vmul.f32 %v995, %v989
        %v997 = vadd.f32 %v996, 1e-05
        %v998 = vrsqrt.pop %v997
        %v999 = vmul.f32 %v991, %v998
        %v1000 = vld [vmem:[%s7 + $0x1] sm:$0x1]
        %v1001 = vlaneseq
        %v1002 = vshrl.u32 %v1001, 7
        %v1003 = vsub.s32 0, %v1002
        %v1004 = vrot.slane %v1000, %v1003
        %v1005 = vmul.f32 %v999, %v1004
        %v1006 = vld [vmem:[%s7 + $0x2] sm:$0x1]
        %v1007 = vlaneseq
        %v1008 = vshrl.u32 %v1007, 7
        %v1009 = vsub.s32 0, %v1008
        %v1010 = vrot.slane %v1006, %v1009
        %v1011 = vadd.f32 %v1005, %v1010
        %1012 = vst.msk [vmem:[%s398] sm:$0xff] %vm439, %v1011
        %s1013 = sand.u32 %s241, 1
        %s1014 = scalar_lea.sflag [#allocation3], %s1013
        %s1015 = sand.u32 %s241, 1
        %s1016 = smul.addr %s1015, 8
        %s1017 = scalar_lea.vmem [#allocation2], %s1016
        %s1018 = sand.u32 %s269, 1
        %s1019 = scalar_lea.sflag [#allocation5], %s1018
        %s1020 = sand.u32 %s269, 1
        %s1021 = smul.addr %s1020, 16
        %s1022 = scalar_lea.vmem [#allocation4], %s1021
        // Predicated region
        $region53: #{tpu_custom_call.1} parent=51 // pred_check
          %p1023 = pneg %p251
        $region54: #{tpu_custom_call.1} parent=51 // pred_check_branch
          %1025 = sbr.rel (%p1023) target = $region56
        $region55: #{tpu_custom_call.1} parent=51 // pred_region
          %s1027 = ssub.s32 128, 128
          %1028 = vsyncadd %s1014, %s1027
          %s1029 = sadd.s32 %s32, %s31
          %s1030 = smul.addr %s1029, 128
          %s1031 = scalar_lea.hbm %s8, %s1030
          %s1033 = sshll.u32 %s1017, 4
          %s1034 = int_to_ptr.vmem [resolvable:$true] %s1033
          %1036 = dma.vmem_to_hbm [thread:$0]  %s1034, 128, %s1031, %s1014
        $region56: #{tpu_custom_call.1} parent=51 // pred_fallthru
          _
        // Predicated region
        $region57: #{tpu_custom_call.1} parent=51 // pred_check
          %p1037 = pneg %p279
        $region58: #{tpu_custom_call.1} parent=51 // pred_check_branch
          %1039 = sbr.rel (%p1037) target = $region60
        $region59: #{tpu_custom_call.1} parent=51 // pred_region
          %s1041 = ssub.s32 256, 256
          %1042 = vsyncadd %s1019, %s1041
          %s1043 = sadd.s32 %s32, %s31
          %s1044 = smul.addr %s1043, 128
          %s1045 = scalar_lea.hbm %s9, %s1044
          %s1046 = sshll.u32 %s1022, 4
          %s1047 = int_to_ptr.vmem [resolvable:$true] %s1046
          %1052 = dma.vmem_to_hbm [thread:$0]  %s1047, 256, %s1045, %s1019, 128, 256, 8
        $region60: #{tpu_custom_call.1} parent=51 // pred_fallthru
          _
      $region52: #{tpu_custom_call.1} parent=5 // pred_fallthru
        _
      %p1053 = scmp.le.s32.totalorder 2, %s22
      // Predicated region
      $region61: #{tpu_custom_call.1} parent=5 // pred_check
        %p1054 = pneg %p1053
      $region62: #{tpu_custom_call.1} parent=5 // pred_check_branch
        %1056 = sbr.rel (%p1054) target = $region64
      $region63: #{tpu_custom_call.1} parent=5 // pred_region
        %s1057 = ssub.s32 %s22, 2
        // Predicated region
        $region65: #{tpu_custom_call.1} parent=63 // pred_check
          %p1058 = pneg %p257
        $region66: #{tpu_custom_call.1} parent=63 // pred_check_branch
          %1060 = sbr.rel (%p1058) target = $region68
        $region67: #{tpu_custom_call.1} parent=63 // pred_region
          %s1061 = sand.u32 %s242, 1
          %s1062 = scalar_lea.sflag [#allocation3], %s1061
          %s1063 = sand.u32 %s242, 1
          %s1064 = smul.addr %s1063, 8
          %s1065 = scalar_lea.vmem [#allocation2], %s1064
          %1066 = dma.done %s1062, 128
        $region68: #{tpu_custom_call.1} parent=63 // pred_fallthru
          _
        // Predicated region
        $region69: #{tpu_custom_call.1} parent=63 // pred_check
          %p1067 = pneg %p285
        $region70: #{tpu_custom_call.1} parent=63 // pred_check_branch
          %1069 = sbr.rel (%p1067) target = $region72
        $region71: #{tpu_custom_call.1} parent=63 // pred_region
          %s1070 = sand.u32 %s270, 1
          %s1071 = scalar_lea.sflag [#allocation5], %s1070
          %s1072 = sand.u32 %s270, 1
          %s1073 = smul.addr %s1072, 16
          %s1074 = scalar_lea.vmem [#allocation4], %s1073
          %1075 = dma.done %s1071, 256
        $region72: #{tpu_custom_call.1} parent=63 // pred_fallthru
          _
      $region64: #{tpu_custom_call.1} parent=5 // pred_fallthru
        _
    $region6: #{tpu_custom_call.1} parent=1 // loop_footer
      %s26 = sadd.s32 1, %s22
    $region7: #{tpu_custom_call.1} parent=1 // loop_footer_branch
      %21 = sbr.rel target = $region3
    $region8: #{tpu_custom_call.1} parent=1 // loop_exit
      _
    %1076 = vsyncpa [#allocation3], 1
    %s1077 = scalar_lea.sflag [#allocation3], 1
    %1078 = vsyncpa %s1077, 1
    %1079 = vsyncpa [#allocation5], 1
    %s1080 = scalar_lea.sflag [#allocation5], 1
    %1081 = vsyncpa %s1080, 1

</llo_original>
